<compile_context>
chip_gen: v7x
topology: tpu7x:2x2x1
jax: 0.10.0
libtpu: 0.0.40
codegen_flags: <defaults>
</compile_context>

<pallas_src>
import functools

import jax
import jax.numpy as jnp
from jax.experimental import pallas as pl
from jax.experimental.pallas import tpu as pltpu


def _attn_kernel(wq_ref, wkv_ref, xq_ref, xkv_ref, o_ref,
                 q_scr, m_scr, l_scr, acc_scr, *opt_scratch,
                 num_heads, use_kv_cache):
    """One (batch, q-tile, kv-tile) grid step.

    wq_ref  : (E, E)      bf16  q projection weight (pre-transposed, pre-scaled)
    wkv_ref : (E, 2E)     bf16  fused k|v projection weight (pre-transposed)
    xq_ref  : (1, tq, E)  bf16  query-side input tile
    xkv_ref : (1, tkv, E) bf16  key/value-side input tile (only read at qi == 0
                                when the K|V cache is enabled)
    o_ref   : (1, tq, E)        lane-dense output tile (written at last kv step)
    q_scr   : (tq, E)     bf16  projected (pre-scaled) queries, all heads
    m_scr   : (H, tq, 1)  f32   per-head running max   (in-place per-head update)
    l_scr   : (H, tq, 1)  f32   per-head running sum   (in-place per-head update)
    acc_scr : (tq, E)     f32   output accumulator, heads lane-concatenated
    opt_scratch[0] (if use_kv_cache): (T, 2E) bf16 persistent projected K|V cache
    """
    H = num_heads
    E = wq_ref.shape[0]
    hd = E // H
    tkv = xkv_ref.shape[1]

    qi = pl.program_id(1)
    ki = pl.program_id(2)
    nk = pl.num_programs(2)

    # ---- once per (batch, q-tile): all-head query projection + state init ----
    # (softmax scale is already folded into wq by the wrapper)
    @pl.when(ki == 0)
    def _init():
        q = jnp.dot(xq_ref[0], wq_ref[...],
                    preferred_element_type=jnp.float32)            # (tq, E) f32
        q_scr[...] = q.astype(q_scr.dtype)
        m_scr[...] = jnp.full_like(m_scr, -jnp.inf)
        l_scr[...] = jnp.zeros_like(l_scr)
        acc_scr[...] = jnp.zeros_like(acc_scr)

    # ---- projected K|V for this kv tile --------------------------------------
    if use_kv_cache:
        kv_cache = opt_scratch[0]
        kv_off = pl.multiple_of(ki * tkv, tkv)

        # Projection computed once per (batch, kv-tile): filled while sweeping
        # the kv axis at qi == 0, reused for every later q tile of this batch.
        @pl.when(qi == 0)
        def _fill_cache():
            kv_new = jnp.dot(xkv_ref[0], wkv_ref[...],
                             preferred_element_type=jnp.float32)
            kv_cache[pl.ds(kv_off, tkv), :] = kv_new.astype(kv_cache.dtype)

        kv = kv_cache[pl.ds(kv_off, tkv), :]                       # (tkv, 2E) bf16
    else:
        kv = jnp.dot(xkv_ref[0], wkv_ref[...],
                     preferred_element_type=jnp.float32).astype(jnp.bfloat16)

    k_all = kv[:, 0:E]             # (tkv, E)
    v_all = kv[:, E:2 * E]         # (tkv, E)

    # ---- per-head online-softmax update: in-place scratch RMW, no concats ----
    for h in range(H):             # static unroll; all lane slices are static
        lo, hi = h * hd, (h + 1) * hd
        q_h = q_scr[:, lo:hi]      # (tq, hd) bf16, already scaled
        k_h = k_all[:, lo:hi]      # (tkv, hd)
        v_h = v_all[:, lo:hi]      # (tkv, hd)

        # scores: contract head_dim of both operands (no explicit transpose)
        s = jax.lax.dot_general(q_h, k_h, (((1,), (1,)), ((), ())),
                                preferred_element_type=jnp.float32)  # (tq, tkv)

        m_prev = m_scr[h]                                            # (tq, 1)
        m_new = jnp.maximum(m_prev, jnp.max(s, axis=-1, keepdims=True))
        alpha = jnp.exp(m_prev - m_new)                              # (tq, 1)
        # f32 exp; on v6e/v7x a bf16 exp would double EUP throughput if the EUP
        # ever becomes the binding slot (not done here; keeps v5e path identical).
        p = jnp.exp(s - m_new)                                       # (tq, tkv) f32

        m_scr[h] = m_new
        l_scr[h] = alpha * l_scr[h] + jnp.sum(p, axis=-1, keepdims=True)
        pv = jnp.dot(p.astype(jnp.bfloat16), v_h,
                     preferred_element_type=jnp.float32)             # (tq, hd)
        acc_scr[:, lo:hi] = alpha * acc_scr[:, lo:hi] + pv

    # ---- last kv step: normalize and write the lane-dense (1, tq, E) block ---
    @pl.when(ki == nk - 1)
    def _finalize():
        for h in range(H):
            lo, hi = h * hd, (h + 1) * hd
            inv_l = pl.reciprocal(l_scr[h], approx=True)             # (tq, 1), EUP
            o_ref[0, :, lo:hi] = (acc_scr[:, lo:hi] * inv_l).astype(o_ref.dtype)


def _pick_tile(total: int, target: int) -> int:
    """Largest divisor of `total` <= target, preferring multiples of 128 (MXU rows),
    then 16 (bf16 sublane packing), then 8.  Falls back to the full dimension."""
    if total <= target:
        return total
    for align in (128, 16, 8):
        for cand in range(target, align - 1, -1):
            if total % cand == 0 and cand % align == 0:
                return cand
    return total


def _vmem_capacity_bytes() -> int:
    try:
        return int(pltpu.get_tpu_info().vmem_capacity_bytes)
    except Exception:
        return 64 << 20   # conservative fallback (v7x per-core VMEM)


@functools.partial(jax.jit,
                   static_argnames=("num_heads", "q_tile", "kv_tile", "out_dtype"))
def causal_self_attention(x, w_attn, num_heads, q_tile=None, kv_tile=None,
                          out_dtype=jnp.float32):
    """x: (B, T, E) float32; w_attn: (3E, E) float32 (PyTorch Linear layout)."""
    B, T, E = x.shape
    H = num_heads
    assert E % H == 0
    hd = E // H
    scale = float(hd) ** -0.5

    # ---- per-generation VMEM budget & default tile sizes (trace-time) --------
    vmem_cap = _vmem_capacity_bytes()                       # 64 MiB v7x, 128 MiB v5e/v6e
    vmem_limit = min(int(vmem_cap * 0.85), vmem_cap - (4 << 20))
    if q_tile is None:
        q_tile = 256 if vmem_cap <= (64 << 20) else 512     # smaller q tiles on v7x
    if kv_tile is None:
        kv_tile = 512                                       # large kv tile amortizes per-step overhead
    tq = _pick_tile(T, q_tile)
    tkv = _pick_tile(T, kv_tile)

    # Cache the projected K|V for the whole sequence in VMEM only when there is
    # recompute to save (T/tq > 1) and the cache is small vs. the VMEM budget.
    kv_cache_bytes = T * 2 * E * 2                          # (T, 2E) bf16
    use_kv_cache = (T // tq > 1) and (kv_cache_bytes <= vmem_limit // 4)

    # ---- one-time weight prep (transpose so matmuls contract on x's last dim,
    # fold the softmax scale into Wq, split q vs fused k|v, cast to bf16) ------
    w = jnp.asarray(w_attn, jnp.float32)
    wq_t = (w[:E, :].T * scale).astype(jnp.bfloat16)        # (E, E)
    wkv_t = w[E:, :].T.astype(jnp.bfloat16)                 # (E, 2E)  [k cols | v cols]
    x_bf = x.astype(jnp.bfloat16)

    # ---- BlockSpecs -----------------------------------------------------------
    # Weights: constant block index -> fetched once, VMEM-resident; single-buffered
    # (never swapped) so the second pipeline buffer is not allocated.
    wq_spec = pl.BlockSpec((E, E), lambda b, qi, ki: (0, 0),
                           pipeline_mode=pl.Buffered(1))
    wkv_spec = pl.BlockSpec((E, 2 * E), lambda b, qi, ki: (0, 0),
                            pipeline_mode=pl.Buffered(1))
    # Query-side x tile: revisited across the kv axis (no re-DMA).
    xq_spec = pl.BlockSpec((1, tq, E), lambda b, qi, ki: (b, qi, 0))
    if use_kv_cache:
        # Only needed while filling the cache at qi == 0; for qi > 0 pin to a
        # constant block so the unused tile is not re-fetched every kv step.
        xkv_spec = pl.BlockSpec(
            (1, tkv, E), lambda b, qi, ki: (b, jnp.where(qi == 0, ki, 0), 0))
    else:
        xkv_spec = pl.BlockSpec((1, tkv, E), lambda b, qi, ki: (b, ki, 0))

    scratch = [
        pltpu.VMEM((tq, E), jnp.bfloat16),      # projected, pre-scaled q (all heads)
        pltpu.VMEM((H, tq, 1), jnp.float32),    # per-head running max
        pltpu.VMEM((H, tq, 1), jnp.float32),    # per-head running sum
        pltpu.VMEM((tq, E), jnp.float32),       # output accumulator (lane-concat heads)
    ]
    if use_kv_cache:
        scratch.append(pltpu.VMEM((T, 2 * E), jnp.bfloat16))   # projected K|V cache

    # With the cache, the q-tile axis carries a (fill at qi==0 -> reuse) dependency,
    # so it must stay "arbitrary"; batch remains "parallel" (per-core scratch).
    dim_sem = ("parallel",
               "arbitrary" if use_kv_cache else "parallel",
               "arbitrary")

    kernel = functools.partial(_attn_kernel, num_heads=H, use_kv_cache=use_kv_cache)
    out = pl.pallas_call(
        kernel,
        out_shape=jax.ShapeDtypeStruct((B, T, E), out_dtype),
        grid_spec=pltpu.PrefetchScalarGridSpec(
            num_scalar_prefetch=0,
            grid=(B, T // tq, T // tkv),
            in_specs=[wq_spec, wkv_spec, xq_spec, xkv_spec],
            # Lane-dense (1, tq, E) block of the final (B, T, E) output,
            # revisited across the kv axis (accumulator pattern).
            out_specs=pl.BlockSpec((1, tq, E), lambda b, qi, ki: (b, qi, 0)),
            scratch_shapes=scratch,
        ),
        compiler_params=pltpu.CompilerParams(
            dimension_semantics=dim_sem,
            vmem_limit_bytes=vmem_limit),
    )(wq_t, wkv_t, x_bf, x_bf)
    return out


def _reference(x, w_attn, num_heads):
    """Pure-JAX float32 mirror of the PyTorch forward (eval / default path)."""
    B, T, E = x.shape
    H = num_heads
    hd = E // H
    qkv = x @ w_attn.T                                   # (B, T, 3E)
    q, k, v = jnp.split(qkv, 3, axis=-1)
    q = q.reshape(B, T, H, hd).transpose(0, 2, 1, 3)
    k = k.reshape(B, T, H, hd).transpose(0, 2, 1, 3)
    v = v.reshape(B, T, H, hd).transpose(0, 2, 1, 3)
    s = jnp.einsum("bhqd,bhkd->bhqk", q, k) / jnp.sqrt(jnp.float32(hd))
    p = jax.nn.softmax(s, axis=-1)
    y = jnp.einsum("bhqk,bhkd->bhqd", p, v)
    return y.transpose(0, 2, 1, 3).reshape(B, T, E)


if __name__ == "__main__":
    B, T, E, H = 2, 8, 32, 4

    key = jax.random.PRNGKey(0)
    kx, kw, kx2 = jax.random.split(key, 3)

    x = jax.random.normal(kx, (B, T, E), dtype=jnp.float32)
    # c_attn: Linear(E, 3E, bias=False) -> weight shape (3E, E).
    w_attn = jax.random.normal(kw, (3 * E, E), dtype=jnp.float32) * 0.05
    # c_proj: defined in __init__ but never applied in forward() -> omitted.

    # Config 1: single q/kv tile (default tiles cover the whole sequence).
    y = jax.block_until_ready(causal_self_attention(x, w_attn, num_heads=H))
    y_ref = _reference(x, w_attn, H)
    assert y.shape == (B, T, E)
    # bf16 matmul operands + f32 accumulation -> bf16-level tolerance.
    assert jnp.allclose(y, y_ref, atol=2e-2, rtol=2e-2), "mismatch vs reference (1)"

    # Config 2: multiple q and kv tiles -> exercises the online-softmax
    # accumulation across kv steps and the persistent VMEM K|V projection cache.
    B2, T2 = 2, 32
    x2 = jax.random.normal(kx2, (B2, T2, E), dtype=jnp.float32)
    y2 = jax.block_until_ready(
        causal_self_attention(x2, w_attn, num_heads=H, q_tile=8, kv_tile=8))
    y2_ref = _reference(x2, w_attn, H)
    assert y2.shape == (B2, T2, E)
    assert jnp.allclose(y2, y2_ref, atol=2e-2, rtol=2e-2), "mismatch vs reference (2)"

    print("KERNEL_OK")
</pallas_src>

<mosaic_0001>
module attributes {stable_mosaic.version = 11 : i64} {
  func.func @_attn_kernel(%arg0: i32, %arg1: i32, %arg2: i32, %arg3: memref<32x32xbf16, #tpu.memory_space<vmem>>, %arg4: memref<32x64xbf16, #tpu.memory_space<vmem>>, %arg5: memref<1x8x32xbf16, #tpu.memory_space<vmem>>, %arg6: memref<1x8x32xbf16, #tpu.memory_space<vmem>>, %arg7: memref<1x8x32xf32, #tpu.memory_space<vmem>>, %arg8: memref<8x32xbf16, #tpu.memory_space<vmem>>, %arg9: memref<4x8x1xf32, #tpu.memory_space<vmem>>, %arg10: memref<4x8x1xf32, #tpu.memory_space<vmem>>, %arg11: memref<8x32xf32, #tpu.memory_space<vmem>>) attributes {dimension_semantics = [#tpu.dimension_semantics<parallel>, #tpu.dimension_semantics<parallel>, #tpu.dimension_semantics<arbitrary>], iteration_bounds = array<i64: 2, 1, 1>, scalar_prefetch = 0 : i64, scratch_operands = 4 : i64, tpu.core_type = #tpu.core_type<tc>, window_params = [{pipeline_mode = #tpu.pipeline_mode<synchronous>, transform_indices = @transform_0, window_bounds = array<i64: 32, 32>}, {pipeline_mode = #tpu.pipeline_mode<synchronous>, transform_indices = @transform_1, window_bounds = array<i64: 32, 64>}, {transform_indices = @transform_2, window_bounds = array<i64: 1, 8, 32>}, {transform_indices = @transform_3, window_bounds = array<i64: 1, 8, 32>}, {transform_indices = @transform_4, window_bounds = array<i64: 1, 8, 32>}]} {
    %c0_i32 = arith.constant 0 : i32
    %0 = arith.cmpi eq, %arg2, %c0_i32 : i32
    %1 = arith.extui %0 : i1 to i32
    %c0_i32_0 = arith.constant 0 : i32
    %2 = arith.cmpi ne, %1, %c0_i32_0 : i32
    scf.if %2 {
      %c0_89 = arith.constant 0 : index
      %c0_90 = arith.constant 0 : index
      %c0_91 = arith.constant 0 : index
      %145 = vector.load %arg5[%c0_89, %c0_90, %c0_91] : memref<1x8x32xbf16, #tpu.memory_space<vmem>>, vector<1x8x32xbf16>
      %146 = vector.shape_cast %145 : vector<1x8x32xbf16> to vector<8x32xbf16>
      %c0_92 = arith.constant 0 : index
      %c0_93 = arith.constant 0 : index
      %147 = vector.load %arg3[%c0_92, %c0_93] : memref<32x32xbf16, #tpu.memory_space<vmem>>, vector<32x32xbf16>
      %cst_94 = arith.constant dense<0.000000e+00> : vector<8x32xf32>
      %148 = tpu.matmul %146, %147, %cst_94 {dimension_numbers = #tpu.dot_dimension_numbers<[1], [0], [0], [1], [0, 0, 1, 1], [], []>} : vector<8x32xbf16>, vector<32x32xbf16>, vector<8x32xf32> -> vector<8x32xf32>
      %149 = arith.truncf %148 : vector<8x32xf32> to vector<8x32xbf16>
      %c0_95 = arith.constant 0 : index
      %c0_96 = arith.constant 0 : index
      %150 = vector.load %arg8[%c0_95, %c0_96] : memref<8x32xbf16, #tpu.memory_space<vmem>>, vector<8x32xbf16>
      tpu.vector_store %arg8[%c0_95, %c0_96], %149 {strides = array<i32>} : memref<8x32xbf16, #tpu.memory_space<vmem>>, vector<8x32xbf16>,
      %cst_97 = arith.constant 0xFF800000 : f32
      %151 = vector.broadcast %cst_97 : f32 to vector<4x8x1xf32>
      %c0_98 = arith.constant 0 : index
      %c0_99 = arith.constant 0 : index
      %c0_100 = arith.constant 0 : index
      %152 = vector.load %arg9[%c0_98, %c0_99, %c0_100] : memref<4x8x1xf32, #tpu.memory_space<vmem>>, vector<4x8x1xf32>
      tpu.vector_store %arg9[%c0_98, %c0_99, %c0_100], %151 {strides = array<i32>} : memref<4x8x1xf32, #tpu.memory_space<vmem>>, vector<4x8x1xf32>,
      %cst_101 = arith.constant 0.000000e+00 : f32
      %153 = vector.broadcast %cst_101 : f32 to vector<4x8x1xf32>
      %c0_102 = arith.constant 0 : index
      %c0_103 = arith.constant 0 : index
      %c0_104 = arith.constant 0 : index
      %154 = vector.load %arg10[%c0_102, %c0_103, %c0_104] : memref<4x8x1xf32, #tpu.memory_space<vmem>>, vector<4x8x1xf32>
      tpu.vector_store %arg10[%c0_102, %c0_103, %c0_104], %153 {strides = array<i32>} : memref<4x8x1xf32, #tpu.memory_space<vmem>>, vector<4x8x1xf32>,
      %cst_105 = arith.constant 0.000000e+00 : f32
      %155 = vector.broadcast %cst_105 : f32 to vector<8x32xf32>
      %c0_106 = arith.constant 0 : index
      %c0_107 = arith.constant 0 : index
      %156 = vector.load %arg11[%c0_106, %c0_107] : memref<8x32xf32, #tpu.memory_space<vmem>>, vector<8x32xf32>
      tpu.vector_store %arg11[%c0_106, %c0_107], %155 {strides = array<i32>} : memref<8x32xf32, #tpu.memory_space<vmem>>, vector<8x32xf32>,
    } else {
    }
    %c0 = arith.constant 0 : index
    %c0_1 = arith.constant 0 : index
    %c0_2 = arith.constant 0 : index
    %3 = vector.load %arg6[%c0, %c0_1, %c0_2] : memref<1x8x32xbf16, #tpu.memory_space<vmem>>, vector<1x8x32xbf16>
    %4 = vector.shape_cast %3 : vector<1x8x32xbf16> to vector<8x32xbf16>
    %c0_3 = arith.constant 0 : index
    %c0_4 = arith.constant 0 : index
    %5 = vector.load %arg4[%c0_3, %c0_4] : memref<32x64xbf16, #tpu.memory_space<vmem>>, vector<32x64xbf16>
    %cst = arith.constant dense<0.000000e+00> : vector<8x64xf32>
    %6 = tpu.matmul %4, %5, %cst {dimension_numbers = #tpu.dot_dimension_numbers<[1], [0], [0], [1], [0, 0, 1, 1], [], []>} : vector<8x32xbf16>, vector<32x64xbf16>, vector<8x64xf32> -> vector<8x64xf32>
    %7 = arith.truncf %6 : vector<8x64xf32> to vector<8x64xbf16>
    %8 = vector.extract_strided_slice %7 {offsets = [0, 0], sizes = [8, 32], strides = [1, 1]} : vector<8x64xbf16> to vector<8x32xbf16>
    %9 = vector.extract_strided_slice %7 {offsets = [0, 32], sizes = [8, 32], strides = [1, 1]} : vector<8x64xbf16> to vector<8x32xbf16>
    %c0_5 = arith.constant 0 : index
    %c0_6 = arith.constant 0 : index
    %10 = vector.load %arg8[%c0_5, %c0_6] : memref<8x32xbf16, #tpu.memory_space<vmem>>, vector<8x8xbf16>
    %11 = vector.extract_strided_slice %8 {offsets = [0, 0], sizes = [8, 8], strides = [1, 1]} : vector<8x32xbf16> to vector<8x8xbf16>
    %12 = vector.extract_strided_slice %9 {offsets = [0, 0], sizes = [8, 8], strides = [1, 1]} : vector<8x32xbf16> to vector<8x8xbf16>
    %cst_7 = arith.constant dense<0.000000e+00> : vector<8x8xf32>
    %13 = tpu.matmul %10, %11, %cst_7 {dimension_numbers = #tpu.dot_dimension_numbers<[1], [1], [0], [0], [0, 0, 1, 0], [], []>} : vector<8x8xbf16>, vector<8x8xbf16>, vector<8x8xf32> -> vector<8x8xf32>
    %c0_8 = arith.constant 0 : index
    %c0_9 = arith.constant 0 : index
    %c0_10 = arith.constant 0 : index
    %14 = vector.load %arg9[%c0_8, %c0_9, %c0_10] : memref<4x8x1xf32, #tpu.memory_space<vmem>>, vector<1x8x1xf32>
    %15 = vector.shape_cast %14 : vector<1x8x1xf32> to vector<8x1xf32>
    %cst_11 = arith.constant dense<0xFF800000> : vector<8xf32>
    %16 = vector.multi_reduction <maximumf>, %13, %cst_11 [1] : vector<8x8xf32> to vector<8xf32>
    %17 = vector.shape_cast %16 : vector<8xf32> to vector<8x1xf32>
    %18 = arith.maximumf %15, %17 : vector<8x1xf32>
    %19 = arith.subf %15, %18 : vector<8x1xf32>
    %20 = math.exp %19 : vector<8x1xf32>
    %21 = vector.broadcast %18 : vector<8x1xf32> to vector<8x8xf32>
    %22 = arith.subf %13, %21 : vector<8x8xf32>
    %23 = math.exp %22 : vector<8x8xf32>
    %c0_12 = arith.constant 0 : index
    %c0_13 = arith.constant 0 : index
    %c0_14 = arith.constant 0 : index
    %24 = vector.load %arg9[%c0_12, %c0_13, %c0_14] : memref<4x8x1xf32, #tpu.memory_space<vmem>>, vector<1x8x1xf32>
    %25 = vector.shape_cast %24 : vector<1x8x1xf32> to vector<8x1xf32>
    %26 = vector.shape_cast %18 : vector<8x1xf32> to vector<1x8x1xf32>
    tpu.vector_store %arg9[%c0_12, %c0_13, %c0_14], %26 {strides = array<i32>} : memref<4x8x1xf32, #tpu.memory_space<vmem>>, vector<1x8x1xf32>,
    %c0_15 = arith.constant 0 : index
    %c0_16 = arith.constant 0 : index
    %c0_17 = arith.constant 0 : index
    %27 = vector.load %arg10[%c0_15, %c0_16, %c0_17] : memref<4x8x1xf32, #tpu.memory_space<vmem>>, vector<1x8x1xf32>
    %28 = vector.shape_cast %27 : vector<1x8x1xf32> to vector<8x1xf32>
    %29 = arith.mulf %20, %28 : vector<8x1xf32>
    %cst_18 = arith.constant dense<0.000000e+00> : vector<8xf32>
    %30 = vector.multi_reduction <add>, %23, %cst_18 [1] : vector<8x8xf32> to vector<8xf32>
    %31 = vector.shape_cast %30 : vector<8xf32> to vector<8x1xf32>
    %32 = arith.addf %29, %31 : vector<8x1xf32>
    %c0_19 = arith.constant 0 : index
    %c0_20 = arith.constant 0 : index
    %c0_21 = arith.constant 0 : index
    %33 = vector.load %arg10[%c0_19, %c0_20, %c0_21] : memref<4x8x1xf32, #tpu.memory_space<vmem>>, vector<1x8x1xf32>
    %34 = vector.shape_cast %33 : vector<1x8x1xf32> to vector<8x1xf32>
    %35 = vector.shape_cast %32 : vector<8x1xf32> to vector<1x8x1xf32>
    tpu.vector_store %arg10[%c0_19, %c0_20, %c0_21], %35 {strides = array<i32>} : memref<4x8x1xf32, #tpu.memory_space<vmem>>, vector<1x8x1xf32>,
    %36 = arith.truncf %23 : vector<8x8xf32> to vector<8x8xbf16>
    %cst_22 = arith.constant dense<0.000000e+00> : vector<8x8xf32>
    %37 = tpu.matmul %36, %12, %cst_22 {dimension_numbers = #tpu.dot_dimension_numbers<[1], [0], [0], [1], [0, 0, 1, 1], [], []>} : vector<8x8xbf16>, vector<8x8xbf16>, vector<8x8xf32> -> vector<8x8xf32>
    %c0_23 = arith.constant 0 : index
    %c0_24 = arith.constant 0 : index
    %38 = vector.load %arg11[%c0_23, %c0_24] : memref<8x32xf32, #tpu.memory_space<vmem>>, vector<8x8xf32>
    %39 = vector.broadcast %20 : vector<8x1xf32> to vector<8x8xf32>
    %40 = arith.mulf %39, %38 : vector<8x8xf32>
    %41 = arith.addf %40, %37 : vector<8x8xf32>
    %c0_25 = arith.constant 0 : index
    %c0_26 = arith.constant 0 : index
    %42 = vector.load %arg11[%c0_25, %c0_26] : memref<8x32xf32, #tpu.memory_space<vmem>>, vector<8x8xf32>
    tpu.vector_store %arg11[%c0_25, %c0_26], %41 {strides = array<i32>} : memref<8x32xf32, #tpu.memory_space<vmem>>, vector<8x8xf32>,
    %c0_27 = arith.constant 0 : index
    %c8 = arith.constant 8 : index
    %43 = vector.load %arg8[%c0_27, %c8] : memref<8x32xbf16, #tpu.memory_space<vmem>>, vector<8x8xbf16>
    %44 = vector.extract_strided_slice %8 {offsets = [0, 8], sizes = [8, 8], strides = [1, 1]} : vector<8x32xbf16> to vector<8x8xbf16>
    %45 = vector.extract_strided_slice %9 {offsets = [0, 8], sizes = [8, 8], strides = [1, 1]} : vector<8x32xbf16> to vector<8x8xbf16>
    %cst_28 = arith.constant dense<0.000000e+00> : vector<8x8xf32>
    %46 = tpu.matmul %43, %44, %cst_28 {dimension_numbers = #tpu.dot_dimension_numbers<[1], [1], [0], [0], [0, 0, 1, 0], [], []>} : vector<8x8xbf16>, vector<8x8xbf16>, vector<8x8xf32> -> vector<8x8xf32>
    %c1 = arith.constant 1 : index
    %c0_29 = arith.constant 0 : index
    %c0_30 = arith.constant 0 : index
    %47 = vector.load %arg9[%c1, %c0_29, %c0_30] : memref<4x8x1xf32, #tpu.memory_space<vmem>>, vector<1x8x1xf32>
    %48 = vector.shape_cast %47 : vector<1x8x1xf32> to vector<8x1xf32>
    %cst_31 = arith.constant dense<0xFF800000> : vector<8xf32>
    %49 = vector.multi_reduction <maximumf>, %46, %cst_31 [1] : vector<8x8xf32> to vector<8xf32>
    %50 = vector.shape_cast %49 : vector<8xf32> to vector<8x1xf32>
    %51 = arith.maximumf %48, %50 : vector<8x1xf32>
    %52 = arith.subf %48, %51 : vector<8x1xf32>
    %53 = math.exp %52 : vector<8x1xf32>
    %54 = vector.broadcast %51 : vector<8x1xf32> to vector<8x8xf32>
    %55 = arith.subf %46, %54 : vector<8x8xf32>
    %56 = math.exp %55 : vector<8x8xf32>
    %c1_32 = arith.constant 1 : index
    %c0_33 = arith.constant 0 : index
    %c0_34 = arith.constant 0 : index
    %57 = vector.load %arg9[%c1_32, %c0_33, %c0_34] : memref<4x8x1xf32, #tpu.memory_space<vmem>>, vector<1x8x1xf32>
    %58 = vector.shape_cast %57 : vector<1x8x1xf32> to vector<8x1xf32>
    %59 = vector.shape_cast %51 : vector<8x1xf32> to vector<1x8x1xf32>
    tpu.vector_store %arg9[%c1_32, %c0_33, %c0_34], %59 {strides = array<i32>} : memref<4x8x1xf32, #tpu.memory_space<vmem>>, vector<1x8x1xf32>,
    %c1_35 = arith.constant 1 : index
    %c0_36 = arith.constant 0 : index
    %c0_37 = arith.constant 0 : index
    %60 = vector.load %arg10[%c1_35, %c0_36, %c0_37] : memref<4x8x1xf32, #tpu.memory_space<vmem>>, vector<1x8x1xf32>
    %61 = vector.shape_cast %60 : vector<1x8x1xf32> to vector<8x1xf32>
    %62 = arith.mulf %53, %61 : vector<8x1xf32>
    %cst_38 = arith.constant dense<0.000000e+00> : vector<8xf32>
    %63 = vector.multi_reduction <add>, %56, %cst_38 [1] : vector<8x8xf32> to vector<8xf32>
    %64 = vector.shape_cast %63 : vector<8xf32> to vector<8x1xf32>
    %65 = arith.addf %62, %64 : vector<8x1xf32>
    %c1_39 = arith.constant 1 : index
    %c0_40 = arith.constant 0 : index
    %c0_41 = arith.constant 0 : index
    %66 = vector.load %arg10[%c1_39, %c0_40, %c0_41] : memref<4x8x1xf32, #tpu.memory_space<vmem>>, vector<1x8x1xf32>
    %67 = vector.shape_cast %66 : vector<1x8x1xf32> to vector<8x1xf32>
    %68 = vector.shape_cast %65 : vector<8x1xf32> to vector<1x8x1xf32>
    tpu.vector_store %arg10[%c1_39, %c0_40, %c0_41], %68 {strides = array<i32>} : memref<4x8x1xf32, #tpu.memory_space<vmem>>, vector<1x8x1xf32>,
    %69 = arith.truncf %56 : vector<8x8xf32> to vector<8x8xbf16>
    %cst_42 = arith.constant dense<0.000000e+00> : vector<8x8xf32>
    %70 = tpu.matmul %69, %45, %cst_42 {dimension_numbers = #tpu.dot_dimension_numbers<[1], [0], [0], [1], [0, 0, 1, 1], [], []>} : vector<8x8xbf16>, vector<8x8xbf16>, vector<8x8xf32> -> vector<8x8xf32>
    %c0_43 = arith.constant 0 : index
    %c8_44 = arith.constant 8 : index
    %71 = vector.load %arg11[%c0_43, %c8_44] : memref<8x32xf32, #tpu.memory_space<vmem>>, vector<8x8xf32>
    %72 = vector.broadcast %53 : vector<8x1xf32> to vector<8x8xf32>
    %73 = arith.mulf %72, %71 : vector<8x8xf32>
    %74 = arith.addf %73, %70 : vector<8x8xf32>
    %c0_45 = arith.constant 0 : index
    %c8_46 = arith.constant 8 : index
    %75 = vector.load %arg11[%c0_45, %c8_46] : memref<8x32xf32, #tpu.memory_space<vmem>>, vector<8x8xf32>
    tpu.vector_store %arg11[%c0_45, %c8_46], %74 {strides = array<i32>} : memref<8x32xf32, #tpu.memory_space<vmem>>, vector<8x8xf32>,
    %c0_47 = arith.constant 0 : index
    %c16 = arith.constant 16 : index
    %76 = vector.load %arg8[%c0_47, %c16] : memref<8x32xbf16, #tpu.memory_space<vmem>>, vector<8x8xbf16>
    %77 = vector.extract_strided_slice %8 {offsets = [0, 16], sizes = [8, 8], strides = [1, 1]} : vector<8x32xbf16> to vector<8x8xbf16>
    %78 = vector.extract_strided_slice %9 {offsets = [0, 16], sizes = [8, 8], strides = [1, 1]} : vector<8x32xbf16> to vector<8x8xbf16>
    %cst_48 = arith.constant dense<0.000000e+00> : vector<8x8xf32>
    %79 = tpu.matmul %76, %77, %cst_48 {dimension_numbers = #tpu.dot_dimension_numbers<[1], [1], [0], [0], [0, 0, 1, 0], [], []>} : vector<8x8xbf16>, vector<8x8xbf16>, vector<8x8xf32> -> vector<8x8xf32>
    %c2 = arith.constant 2 : index
    %c0_49 = arith.constant 0 : index
    %c0_50 = arith.constant 0 : index
    %80 = vector.load %arg9[%c2, %c0_49, %c0_50] : memref<4x8x1xf32, #tpu.memory_space<vmem>>, vector<1x8x1xf32>
    %81 = vector.shape_cast %80 : vector<1x8x1xf32> to vector<8x1xf32>
    %cst_51 = arith.constant dense<0xFF800000> : vector<8xf32>
    %82 = vector.multi_reduction <maximumf>, %79, %cst_51 [1] : vector<8x8xf32> to vector<8xf32>
    %83 = vector.shape_cast %82 : vector<8xf32> to vector<8x1xf32>
    %84 = arith.maximumf %81, %83 : vector<8x1xf32>
    %85 = arith.subf %81, %84 : vector<8x1xf32>
    %86 = math.exp %85 : vector<8x1xf32>
    %87 = vector.broadcast %84 : vector<8x1xf32> to vector<8x8xf32>
    %88 = arith.subf %79, %87 : vector<8x8xf32>
    %89 = math.exp %88 : vector<8x8xf32>
    %c2_52 = arith.constant 2 : index
    %c0_53 = arith.constant 0 : index
    %c0_54 = arith.constant 0 : index
    %90 = vector.load %arg9[%c2_52, %c0_53, %c0_54] : memref<4x8x1xf32, #tpu.memory_space<vmem>>, vector<1x8x1xf32>
    %91 = vector.shape_cast %90 : vector<1x8x1xf32> to vector<8x1xf32>
    %92 = vector.shape_cast %84 : vector<8x1xf32> to vector<1x8x1xf32>
    tpu.vector_store %arg9[%c2_52, %c0_53, %c0_54], %92 {strides = array<i32>} : memref<4x8x1xf32, #tpu.memory_space<vmem>>, vector<1x8x1xf32>,
    %c2_55 = arith.constant 2 : index
    %c0_56 = arith.constant 0 : index
    %c0_57 = arith.constant 0 : index
    %93 = vector.load %arg10[%c2_55, %c0_56, %c0_57] : memref<4x8x1xf32, #tpu.memory_space<vmem>>, vector<1x8x1xf32>
    %94 = vector.shape_cast %93 : vector<1x8x1xf32> to vector<8x1xf32>
    %95 = arith.mulf %86, %94 : vector<8x1xf32>
    %cst_58 = arith.constant dense<0.000000e+00> : vector<8xf32>
    %96 = vector.multi_reduction <add>, %89, %cst_58 [1] : vector<8x8xf32> to vector<8xf32>
    %97 = vector.shape_cast %96 : vector<8xf32> to vector<8x1xf32>
    %98 = arith.addf %95, %97 : vector<8x1xf32>
    %c2_59 = arith.constant 2 : index
    %c0_60 = arith.constant 0 : index
    %c0_61 = arith.constant 0 : index
    %99 = vector.load %arg10[%c2_59, %c0_60, %c0_61] : memref<4x8x1xf32, #tpu.memory_space<vmem>>, vector<1x8x1xf32>
    %100 = vector.shape_cast %99 : vector<1x8x1xf32> to vector<8x1xf32>
    %101 = vector.shape_cast %98 : vector<8x1xf32> to vector<1x8x1xf32>
    tpu.vector_store %arg10[%c2_59, %c0_60, %c0_61], %101 {strides = array<i32>} : memref<4x8x1xf32, #tpu.memory_space<vmem>>, vector<1x8x1xf32>,
    %102 = arith.truncf %89 : vector<8x8xf32> to vector<8x8xbf16>
    %cst_62 = arith.constant dense<0.000000e+00> : vector<8x8xf32>
    %103 = tpu.matmul %102, %78, %cst_62 {dimension_numbers = #tpu.dot_dimension_numbers<[1], [0], [0], [1], [0, 0, 1, 1], [], []>} : vector<8x8xbf16>, vector<8x8xbf16>, vector<8x8xf32> -> vector<8x8xf32>
    %c0_63 = arith.constant 0 : index
    %c16_64 = arith.constant 16 : index
    %104 = vector.load %arg11[%c0_63, %c16_64] : memref<8x32xf32, #tpu.memory_space<vmem>>, vector<8x8xf32>
    %105 = vector.broadcast %86 : vector<8x1xf32> to vector<8x8xf32>
    %106 = arith.mulf %105, %104 : vector<8x8xf32>
    %107 = arith.addf %106, %103 : vector<8x8xf32>
    %c0_65 = arith.constant 0 : index
    %c16_66 = arith.constant 16 : index
    %108 = vector.load %arg11[%c0_65, %c16_66] : memref<8x32xf32, #tpu.memory_space<vmem>>, vector<8x8xf32>
    tpu.vector_store %arg11[%c0_65, %c16_66], %107 {strides = array<i32>} : memref<8x32xf32, #tpu.memory_space<vmem>>, vector<8x8xf32>,
    %c0_67 = arith.constant 0 : index
    %c24 = arith.constant 24 : index
    %109 = vector.load %arg8[%c0_67, %c24] : memref<8x32xbf16, #tpu.memory_space<vmem>>, vector<8x8xbf16>
    %110 = vector.extract_strided_slice %8 {offsets = [0, 24], sizes = [8, 8], strides = [1, 1]} : vector<8x32xbf16> to vector<8x8xbf16>
    %111 = vector.extract_strided_slice %9 {offsets = [0, 24], sizes = [8, 8], strides = [1, 1]} : vector<8x32xbf16> to vector<8x8xbf16>
    %cst_68 = arith.constant dense<0.000000e+00> : vector<8x8xf32>
    %112 = tpu.matmul %109, %110, %cst_68 {dimension_numbers = #tpu.dot_dimension_numbers<[1], [1], [0], [0], [0, 0, 1, 0], [], []>} : vector<8x8xbf16>, vector<8x8xbf16>, vector<8x8xf32> -> vector<8x8xf32>
    %c3 = arith.constant 3 : index
    %c0_69 = arith.constant 0 : index
    %c0_70 = arith.constant 0 : index
    %113 = vector.load %arg9[%c3, %c0_69, %c0_70] : memref<4x8x1xf32, #tpu.memory_space<vmem>>, vector<1x8x1xf32>
    %114 = vector.shape_cast %113 : vector<1x8x1xf32> to vector<8x1xf32>
    %cst_71 = arith.constant dense<0xFF800000> : vector<8xf32>
    %115 = vector.multi_reduction <maximumf>, %112, %cst_71 [1] : vector<8x8xf32> to vector<8xf32>
    %116 = vector.shape_cast %115 : vector<8xf32> to vector<8x1xf32>
    %117 = arith.maximumf %114, %116 : vector<8x1xf32>
    %118 = arith.subf %114, %117 : vector<8x1xf32>
    %119 = math.exp %118 : vector<8x1xf32>
    %120 = vector.broadcast %117 : vector<8x1xf32> to vector<8x8xf32>
    %121 = arith.subf %112, %120 : vector<8x8xf32>
    %122 = math.exp %121 : vector<8x8xf32>
    %c3_72 = arith.constant 3 : index
    %c0_73 = arith.constant 0 : index
    %c0_74 = arith.constant 0 : index
    %123 = vector.load %arg9[%c3_72, %c0_73, %c0_74] : memref<4x8x1xf32, #tpu.memory_space<vmem>>, vector<1x8x1xf32>
    %124 = vector.shape_cast %123 : vector<1x8x1xf32> to vector<8x1xf32>
    %125 = vector.shape_cast %117 : vector<8x1xf32> to vector<1x8x1xf32>
    tpu.vector_store %arg9[%c3_72, %c0_73, %c0_74], %125 {strides = array<i32>} : memref<4x8x1xf32, #tpu.memory_space<vmem>>, vector<1x8x1xf32>,
    %c3_75 = arith.constant 3 : index
    %c0_76 = arith.constant 0 : index
    %c0_77 = arith.constant 0 : index
    %126 = vector.load %arg10[%c3_75, %c0_76, %c0_77] : memref<4x8x1xf32, #tpu.memory_space<vmem>>, vector<1x8x1xf32>
    %127 = vector.shape_cast %126 : vector<1x8x1xf32> to vector<8x1xf32>
    %128 = arith.mulf %119, %127 : vector<8x1xf32>
    %cst_78 = arith.constant dense<0.000000e+00> : vector<8xf32>
    %129 = vector.multi_reduction <add>, %122, %cst_78 [1] : vector<8x8xf32> to vector<8xf32>
    %130 = vector.shape_cast %129 : vector<8xf32> to vector<8x1xf32>
    %131 = arith.addf %128, %130 : vector<8x1xf32>
    %c3_79 = arith.constant 3 : index
    %c0_80 = arith.constant 0 : index
    %c0_81 = arith.constant 0 : index
    %132 = vector.load %arg10[%c3_79, %c0_80, %c0_81] : memref<4x8x1xf32, #tpu.memory_space<vmem>>, vector<1x8x1xf32>
    %133 = vector.shape_cast %132 : vector<1x8x1xf32> to vector<8x1xf32>
    %134 = vector.shape_cast %131 : vector<8x1xf32> to vector<1x8x1xf32>
    tpu.vector_store %arg10[%c3_79, %c0_80, %c0_81], %134 {strides = array<i32>} : memref<4x8x1xf32, #tpu.memory_space<vmem>>, vector<1x8x1xf32>,
    %135 = arith.truncf %122 : vector<8x8xf32> to vector<8x8xbf16>
    %cst_82 = arith.constant dense<0.000000e+00> : vector<8x8xf32>
    %136 = tpu.matmul %135, %111, %cst_82 {dimension_numbers = #tpu.dot_dimension_numbers<[1], [0], [0], [1], [0, 0, 1, 1], [], []>} : vector<8x8xbf16>, vector<8x8xbf16>, vector<8x8xf32> -> vector<8x8xf32>
    %c0_83 = arith.constant 0 : index
    %c24_84 = arith.constant 24 : index
    %137 = vector.load %arg11[%c0_83, %c24_84] : memref<8x32xf32, #tpu.memory_space<vmem>>, vector<8x8xf32>
    %138 = vector.broadcast %119 : vector<8x1xf32> to vector<8x8xf32>
    %139 = arith.mulf %138, %137 : vector<8x8xf32>
    %140 = arith.addf %139, %136 : vector<8x8xf32>
    %c0_85 = arith.constant 0 : index
    %c24_86 = arith.constant 24 : index
    %141 = vector.load %arg11[%c0_85, %c24_86] : memref<8x32xf32, #tpu.memory_space<vmem>>, vector<8x8xf32>
    tpu.vector_store %arg11[%c0_85, %c24_86], %140 {strides = array<i32>} : memref<8x32xf32, #tpu.memory_space<vmem>>, vector<8x8xf32>,
    %c0_i32_87 = arith.constant 0 : i32
    %142 = arith.cmpi eq, %arg2, %c0_i32_87 : i32
    %143 = arith.extui %142 : i1 to i32
    %c0_i32_88 = arith.constant 0 : i32
    %144 = arith.cmpi ne, %143, %c0_i32_88 : i32
    scf.if %144 {
      %c0_89 = arith.constant 0 : index
      %c0_90 = arith.constant 0 : index
      %c0_91 = arith.constant 0 : index
      %145 = vector.load %arg10[%c0_89, %c0_90, %c0_91] : memref<4x8x1xf32, #tpu.memory_space<vmem>>, vector<1x8x1xf32>
      %146 = vector.shape_cast %145 : vector<1x8x1xf32> to vector<8x1xf32>
      %147 = tpu.reciprocal %146 {approx = true} : vector<8x1xf32> -> vector<8x1xf32>
      %c0_92 = arith.constant 0 : index
      %c0_93 = arith.constant 0 : index
      %148 = vector.load %arg11[%c0_92, %c0_93] : memref<8x32xf32, #tpu.memory_space<vmem>>, vector<8x8xf32>
      %149 = vector.broadcast %147 : vector<8x1xf32> to vector<8x8xf32>
      %150 = arith.mulf %148, %149 : vector<8x8xf32>
      %c0_94 = arith.constant 0 : index
      %c0_95 = arith.constant 0 : index
      %c0_96 = arith.constant 0 : index
      %151 = vector.load %arg7[%c0_94, %c0_95, %c0_96] : memref<1x8x32xf32, #tpu.memory_space<vmem>>, vector<1x8x8xf32>
      %152 = vector.shape_cast %151 : vector<1x8x8xf32> to vector<8x8xf32>
      %153 = vector.shape_cast %150 : vector<8x8xf32> to vector<1x8x8xf32>
      tpu.vector_store %arg7[%c0_94, %c0_95, %c0_96], %153 {strides = array<i32>} : memref<1x8x32xf32, #tpu.memory_space<vmem>>, vector<1x8x8xf32>,
      %c1_97 = arith.constant 1 : index
      %c0_98 = arith.constant 0 : index
      %c0_99 = arith.constant 0 : index
      %154 = vector.load %arg10[%c1_97, %c0_98, %c0_99] : memref<4x8x1xf32, #tpu.memory_space<vmem>>, vector<1x8x1xf32>
      %155 = vector.shape_cast %154 : vector<1x8x1xf32> to vector<8x1xf32>
      %156 = tpu.reciprocal %155 {approx = true} : vector<8x1xf32> -> vector<8x1xf32>
      %c0_100 = arith.constant 0 : index
      %c8_101 = arith.constant 8 : index
      %157 = vector.load %arg11[%c0_100, %c8_101] : memref<8x32xf32, #tpu.memory_space<vmem>>, vector<8x8xf32>
      %158 = vector.broadcast %156 : vector<8x1xf32> to vector<8x8xf32>
      %159 = arith.mulf %157, %158 : vector<8x8xf32>
      %c0_102 = arith.constant 0 : index
      %c0_103 = arith.constant 0 : index
      %c8_104 = arith.constant 8 : index
      %160 = vector.load %arg7[%c0_102, %c0_103, %c8_104] : memref<1x8x32xf32, #tpu.memory_space<vmem>>, vector<1x8x8xf32>
      %161 = vector.shape_cast %160 : vector<1x8x8xf32> to vector<8x8xf32>
      %162 = vector.shape_cast %159 : vector<8x8xf32> to vector<1x8x8xf32>
      tpu.vector_store %arg7[%c0_102, %c0_103, %c8_104], %162 {strides = array<i32>} : memref<1x8x32xf32, #tpu.memory_space<vmem>>, vector<1x8x8xf32>,
      %c2_105 = arith.constant 2 : index
      %c0_106 = arith.constant 0 : index
      %c0_107 = arith.constant 0 : index
      %163 = vector.load %arg10[%c2_105, %c0_106, %c0_107] : memref<4x8x1xf32, #tpu.memory_space<vmem>>, vector<1x8x1xf32>
      %164 = vector.shape_cast %163 : vector<1x8x1xf32> to vector<8x1xf32>
      %165 = tpu.reciprocal %164 {approx = true} : vector<8x1xf32> -> vector<8x1xf32>
      %c0_108 = arith.constant 0 : index
      %c16_109 = arith.constant 16 : index
      %166 = vector.load %arg11[%c0_108, %c16_109] : memref<8x32xf32, #tpu.memory_space<vmem>>, vector<8x8xf32>
      %167 = vector.broadcast %165 : vector<8x1xf32> to vector<8x8xf32>
      %168 = arith.mulf %166, %167 : vector<8x8xf32>
      %c0_110 = arith.constant 0 : index
      %c0_111 = arith.constant 0 : index
      %c16_112 = arith.constant 16 : index
      %169 = vector.load %arg7[%c0_110, %c0_111, %c16_112] : memref<1x8x32xf32, #tpu.memory_space<vmem>>, vector<1x8x8xf32>
      %170 = vector.shape_cast %169 : vector<1x8x8xf32> to vector<8x8xf32>
      %171 = vector.shape_cast %168 : vector<8x8xf32> to vector<1x8x8xf32>
      tpu.vector_store %arg7[%c0_110, %c0_111, %c16_112], %171 {strides = array<i32>} : memref<1x8x32xf32, #tpu.memory_space<vmem>>, vector<1x8x8xf32>,
      %c3_113 = arith.constant 3 : index
      %c0_114 = arith.constant 0 : index
      %c0_115 = arith.constant 0 : index
      %172 = vector.load %arg10[%c3_113, %c0_114, %c0_115] : memref<4x8x1xf32, #tpu.memory_space<vmem>>, vector<1x8x1xf32>
      %173 = vector.shape_cast %172 : vector<1x8x1xf32> to vector<8x1xf32>
      %174 = tpu.reciprocal %173 {approx = true} : vector<8x1xf32> -> vector<8x1xf32>
      %c0_116 = arith.constant 0 : index
      %c24_117 = arith.constant 24 : index
      %175 = vector.load %arg11[%c0_116, %c24_117] : memref<8x32xf32, #tpu.memory_space<vmem>>, vector<8x8xf32>
      %176 = vector.broadcast %174 : vector<8x1xf32> to vector<8x8xf32>
      %177 = arith.mulf %175, %176 : vector<8x8xf32>
      %c0_118 = arith.constant 0 : index
      %c0_119 = arith.constant 0 : index
      %c24_120 = arith.constant 24 : index
      %178 = vector.load %arg7[%c0_118, %c0_119, %c24_120] : memref<1x8x32xf32, #tpu.memory_space<vmem>>, vector<1x8x8xf32>
      %179 = vector.shape_cast %178 : vector<1x8x8xf32> to vector<8x8xf32>
      %180 = vector.shape_cast %177 : vector<8x8xf32> to vector<1x8x8xf32>
      tpu.vector_store %arg7[%c0_118, %c0_119, %c24_120], %180 {strides = array<i32>} : memref<1x8x32xf32, #tpu.memory_space<vmem>>, vector<1x8x8xf32>,
    } else {
    }
    return
  }
  func.func @transform_0(%arg0: i32, %arg1: i32, %arg2: i32) -> (i32, i32) {
    %c0_i32 = arith.constant 0 : i32
    %c0_i32_0 = arith.constant 0 : i32
    %c0_i32_1 = arith.constant 0 : i32
    return %c0_i32, %c0_i32_0 : i32, i32
  }
  func.func @transform_1(%arg0: i32, %arg1: i32, %arg2: i32) -> (i32, i32) {
    %c0_i32 = arith.constant 0 : i32
    %c0_i32_0 = arith.constant 0 : i32
    %c0_i32_1 = arith.constant 0 : i32
    return %c0_i32, %c0_i32_0 : i32, i32
  }
  func.func @transform_2(%arg0: i32, %arg1: i32, %arg2: i32) -> (i32, i32, i32) {
    %c0_i32 = arith.constant 0 : i32
    %c0_i32_0 = arith.constant 0 : i32
    return %arg0, %arg1, %c0_i32 : i32, i32, i32
  }
  func.func @transform_3(%arg0: i32, %arg1: i32, %arg2: i32) -> (i32, i32, i32) {
    %c0_i32 = arith.constant 0 : i32
    %c0_i32_0 = arith.constant 0 : i32
    return %arg0, %arg2, %c0_i32 : i32, i32, i32
  }
  func.func @transform_4(%arg0: i32, %arg1: i32, %arg2: i32) -> (i32, i32, i32) {
    %c0_i32 = arith.constant 0 : i32
    %c0_i32_0 = arith.constant 0 : i32
    return %arg0, %arg1, %c0_i32 : i32, i32, i32
  }
}

</mosaic_0001>

<llo_original>
// kernel: causal_self_attention.1
$region0: #{causal_self_attention.1}
  #allocation0 [shape = 'u32[]', space=smem, size = 0x4, offset = 0x4, fixed_abs, tag = 'smem constant byte address 0x4 - core index']
  #allocation1 [shape = 'u32[144,128]{1,0:T(1,128)}', space=vmem, size = 0x12000, scoped, tag = 'internal scratch']
  #allocation2 [shape = 'bf16[8,32]{1,0:T(8,128)(2,1)}', space=vmem, size = 0x800, scoped, tag = 'scratch operand']
  #allocation3 [shape = 'f32[4,8,1]{2,1,0:T(8,128)}', space=vmem, size = 0x4000, scoped, tag = 'scratch operand']
  #allocation4 [shape = 'f32[4,8,1]{2,1,0:T(8,128)}', space=vmem, size = 0x4000, scoped, tag = 'scratch operand']
  #allocation5 [shape = 'f32[8,32]{1,0:T(8,128)}', space=vmem, size = 0x1000, scoped, tag = 'scratch operand']
  %s0 = inlined_call_operand.vmem [shape: bf16[32,32], index: 0, kind: input, shape index: {}]
  %s1 = inlined_call_operand.vmem [shape: bf16[32,64], index: 1, kind: input, shape index: {}]
  %s2 = inlined_call_operand.vmem [shape: bf16[2,8,32], index: 2, kind: input, shape index: {}, may-alias: {2,3}]
  %s3 = inlined_call_operand.vmem [shape: bf16[2,8,32], index: 3, kind: input, shape index: {}, may-alias: {2,3}]
  %s4 = inlined_call_operand.hbm [shape: f32[2,8,32], index: 4, kind: output, shape index: {}]
  %s5 = sld [smem:[#allocation0]]
  $region57: #{causal_self_attention.1} parent=0
    _
  %s7 = ssub.s32 1, %s5
  %s8 = scalar_select 0, %s7, %s5
  $region1: #{causal_self_attention.1} parent=0
    #allocation6 [shape = 'u8[8192]{0}', space=vmem, size = 0x2000, scoped, tag = 'output window, operand 0']
    #allocation7 [shape = 's32[2]{0}', space=sflag, size = 0x8, scoped, tag = 'scoped memory for causal_self_attention.1']
    %9 = vsyncpa [#allocation7], 0
    %s10 = scalar_lea.sflag [#allocation7], 1
    %11 = vsyncpa %s10, 0
    loop: start=0, step=1, limit=4
    $region2: #{causal_self_attention.1} parent=1 // loop_pre_header
      _
    $region3: #{causal_self_attention.1} parent=1 // loop_header
      %s13 = sphi 0, %s17
      %p14 = scmp.ge.s32.totalorder %s13, 4
      %s20 = sphi 0, %s39
      %s21 = sphi 0, %s35
      %s22 = sphi 0, %s31
      %s23 = sphi 0, %s20
      %s24 = sphi 0, %s21
      %s25 = sphi 0, %s22
      %s26 = sphi 0, %s23
      %s27 = sphi 0, %s24
      %s28 = sphi 0, %s25
      %s40 = sphi 0, %s40
      %s42 = sphi 0, %s40
      %s43 = sphi 0, %s42
      %s57 = sphi 0, %s43
      %s61 = sphi 0, %s61
      %s63 = sphi 0, %s61
      %s64 = sphi 0, %s63
      %s78 = sphi 0, %s64
      %s86 = sphi 0, %s88
      %s89 = sphi 0, %s86
      %s90 = sphi 0, %s89
      %s106 = sphi 0, %s90
      %s114 = sphi 0, %s116
      %s117 = sphi 0, %s114
      %s118 = sphi 0, %s117
      %s134 = sphi 0, %s118
      %s142 = sphi 0, %s144
      %s145 = sphi 0, %s142
      %s146 = sphi 0, %s145
      %s162 = sphi 0, %s146
    $region4: #{causal_self_attention.1} parent=1 // loop_header_branch
      %16 = sbr.rel (%p14) target = $region8
    $region5: #{causal_self_attention.1} parent=1 // loop_body
      %s18 = ssub.s32 %s13, 1
      %s19 = ssub.s32 %s13, 2
      %s29 = sadd.s32 1, %s22
      %p30 = scmp.ge.s32.totalorder %s29, 1
      %s31 = scalar_select %p30, 0, %s29
      %s32 = sadd.s32 1, %s21
      %s33 = scalar_select %p30, %s32, %s21
      %p34 = scmp.ge.s32.totalorder %s33, 1
      %s35 = scalar_select %p34, 0, %s33
      %s36 = sadd.s32 1, %s20
      %s37 = scalar_select %p34, %s36, %s20
      %p38 = scmp.ge.s32.totalorder %s37, 2
      %s39 = scalar_select %p38, 0, %s37
      %s41 = sadd.s32 %s40, 1
      %p44 = scmp.eq.s32.totalorder %s13, 1
      %p45 = scmp.ne.s32.totalorder %s40, %s42
      %p46 = scmp.eq.s32.totalorder %s13, 0
      %p47 = por %p45, %p46
      %p48 = scmp.ne.s32.totalorder %s40, %s42
      %p49 = scmp.eq.s32.totalorder %s18, 1
      %p50 = por %p48, %p49
      %p51 = scmp.ne.s32.totalorder %s42, %s43
      %p52 = scmp.eq.s32.totalorder %s18, 0
      %p53 = por %p51, %p52
      %p54 = scmp.ne.s32.totalorder %s42, %s43
      %p55 = scmp.eq.s32.totalorder %s19, 1
      %p56 = por %p54, %p55
      %p58 = scmp.ne.s32.totalorder %s43, %s57
      %p59 = scmp.eq.s32.totalorder %s19, 0
      %p60 = por %p58, %p59
      %s62 = sadd.s32 %s61, 1
      %p65 = scmp.eq.s32.totalorder %s13, 1
      %p66 = scmp.ne.s32.totalorder %s61, %s63
      %p67 = scmp.eq.s32.totalorder %s13, 0
      %p68 = por %p66, %p67
      %p69 = scmp.ne.s32.totalorder %s61, %s63
      %p70 = scmp.eq.s32.totalorder %s18, 1
      %p71 = por %p69, %p70
      %p72 = scmp.ne.s32.totalorder %s63, %s64
      %p73 = scmp.eq.s32.totalorder %s18, 0
      %p74 = por %p72, %p73
      %p75 = scmp.ne.s32.totalorder %s63, %s64
      %p76 = scmp.eq.s32.totalorder %s19, 1
      %p77 = por %p75, %p76
      %p79 = scmp.ne.s32.totalorder %s64, %s78
      %p80 = scmp.eq.s32.totalorder %s19, 0
      %p81 = por %p79, %p80
      %s82 = ssub.s32 %s20, %s39
      %s83 = ssub.s32 %s21, %s35
      %s84 = sor.u32 %s82, %s83
      %p85 = scmp.eq.s32.totalorder %s84, 0
      %s87 = sadd.s32 %s86, 1
      %s88 = scalar_select %p85, %s86, %s87
      %p91 = pneg %p85
      %p92 = scmp.eq.s32.totalorder %s13, 1
      %p93 = por %p91, %p92
      %p94 = scmp.ne.s32.totalorder %s86, %s89
      %p95 = scmp.eq.s32.totalorder %s13, 0
      %p96 = por %p94, %p95
      %p97 = scmp.ne.s32.totalorder %s86, %s89
      %p98 = scmp.eq.s32.totalorder %s18, 1
      %p99 = por %p97, %p98
      %p100 = scmp.ne.s32.totalorder %s89, %s90
      %p101 = scmp.eq.s32.totalorder %s18, 0
      %p102 = por %p100, %p101
      %p103 = scmp.ne.s32.totalorder %s89, %s90
      %p104 = scmp.eq.s32.totalorder %s19, 1
      %p105 = por %p103, %p104
      %p107 = scmp.ne.s32.totalorder %s90, %s106
      %p108 = scmp.eq.s32.totalorder %s19, 0
      %p109 = por %p107, %p108
      %s110 = ssub.s32 %s20, %s39
      %s111 = ssub.s32 %s22, %s31
      %s112 = sor.u32 %s110, %s111
      %p113 = scmp.eq.s32.totalorder %s112, 0
      %s115 = sadd.s32 %s114, 1
      %s116 = scalar_select %p113, %s114, %s115
      %p119 = pneg %p113
      %p120 = scmp.eq.s32.totalorder %s13, 1
      %p121 = por %p119, %p120
      %p122 = scmp.ne.s32.totalorder %s114, %s117
      %p123 = scmp.eq.s32.totalorder %s13, 0
      %p124 = por %p122, %p123
      %p125 = scmp.ne.s32.totalorder %s114, %s117
      %p126 = scmp.eq.s32.totalorder %s18, 1
      %p127 = por %p125, %p126
      %p128 = scmp.ne.s32.totalorder %s117, %s118
      %p129 = scmp.eq.s32.totalorder %s18, 0
      %p130 = por %p128, %p129
      %p131 = scmp.ne.s32.totalorder %s117, %s118
      %p132 = scmp.eq.s32.totalorder %s19, 1
      %p133 = por %p131, %p132
      %p135 = scmp.ne.s32.totalorder %s118, %s134
      %p136 = scmp.eq.s32.totalorder %s19, 0
      %p137 = por %p135, %p136
      %s138 = ssub.s32 %s20, %s39
      %s139 = ssub.s32 %s21, %s35
      %s140 = sor.u32 %s138, %s139
      %p141 = scmp.eq.s32.totalorder %s140, 0
      %s143 = sadd.s32 %s142, 1
      %s144 = scalar_select %p141, %s142, %s143
      %p147 = pneg %p141
      %p148 = scmp.eq.s32.totalorder %s13, 1
      %p149 = por %p147, %p148
      %p150 = scmp.ne.s32.totalorder %s142, %s145
      %p151 = scmp.eq.s32.totalorder %s13, 0
      %p152 = por %p150, %p151
      %p153 = scmp.ne.s32.totalorder %s142, %s145
      %p154 = scmp.eq.s32.totalorder %s18, 1
      %p155 = por %p153, %p154
      %p156 = scmp.ne.s32.totalorder %s145, %s146
      %p157 = scmp.eq.s32.totalorder %s18, 0
      %p158 = por %p156, %p157
      %p159 = scmp.ne.s32.totalorder %s145, %s146
      %p160 = scmp.eq.s32.totalorder %s19, 1
      %p161 = por %p159, %p160
      %p163 = scmp.ne.s32.totalorder %s146, %s162
      %p164 = scmp.eq.s32.totalorder %s19, 0
      %p165 = por %p163, %p164
      %p166 = scmp.le.s32.totalorder 1, %s13
      %p167 = scmp.lt.s32.totalorder %s13, 3
      %p168 = pnand %p166, %p167
      %p169 = pneg %p168
      // Predicated region
      $region9: #{causal_self_attention.1} parent=5 // pred_check
        _
      $region10: #{causal_self_attention.1} parent=5 // pred_check_branch
        %171 = sbr.rel (%p168) target = $region12
      $region11: #{causal_self_attention.1} parent=5 // pred_region
        %s172 = ssub.s32 %s13, 1
        // Predicated region
        $region13: #{causal_self_attention.1} parent=11 // pred_check
          %p173 = pneg %p53
        $region14: #{causal_self_attention.1} parent=11 // pred_check_branch
          %175 = sbr.rel (%p173) target = $region16
        $region15: #{causal_self_attention.1} parent=11 // pred_region
          _
        $region16: #{causal_self_attention.1} parent=11 // pred_fallthru
          _
        // Predicated region
        $region17: #{causal_self_attention.1} parent=11 // pred_check
          %p176 = pneg %p74
        $region18: #{causal_self_attention.1} parent=11 // pred_check_branch
          %178 = sbr.rel (%p176) target = $region20
        $region19: #{causal_self_attention.1} parent=11 // pred_region
          _
        $region20: #{causal_self_attention.1} parent=11 // pred_fallthru
          _
      $region12: #{causal_self_attention.1} parent=5 // pred_fallthru
        _
      %p179 = scmp.lt.s32.totalorder %s13, 2
      // Predicated region
      $region21: #{causal_self_attention.1} parent=5 // pred_check
        %p180 = pneg %p179
      $region22: #{causal_self_attention.1} parent=5 // pred_check_branch
        %182 = sbr.rel (%p180) target = $region24
      $region23: #{causal_self_attention.1} parent=5 // pred_region
        // Predicated region
        $region25: #{causal_self_attention.1} parent=23 // pred_check
          %p183 = pneg %p96
        $region26: #{causal_self_attention.1} parent=23 // pred_check_branch
          %185 = sbr.rel (%p183) target = $region28
        $region27: #{causal_self_attention.1} parent=23 // pred_region
          %p186 = scmp.lt.s32.totalorder %s20, 1
          %s187 = scalar_select %p186, %s20, 1
          %p188 = scmp.lt.s32.totalorder %s21, 0
          %s189 = scalar_select %p188, %s21, 0
          %s190 = sadd.s32 %s189, %s187
          %s191 = smul.addr %s190, 4
          %s192 = scalar_lea.vmem %s2, %s191
        $region28: #{causal_self_attention.1} parent=23 // pred_fallthru
          _
        // Predicated region
        $region29: #{causal_self_attention.1} parent=23 // pred_check
          %p193 = pneg %p124
        $region30: #{causal_self_attention.1} parent=23 // pred_check_branch
          %195 = sbr.rel (%p193) target = $region32
        $region31: #{causal_self_attention.1} parent=23 // pred_region
          %p196 = scmp.lt.s32.totalorder %s20, 1
          %s197 = scalar_select %p196, %s20, 1
          %p198 = scmp.lt.s32.totalorder %s22, 0
          %s199 = scalar_select %p198, %s22, 0
          %s200 = sadd.s32 %s199, %s197
          %s201 = smul.addr %s200, 4
          %s202 = scalar_lea.vmem %s3, %s201
        $region32: #{causal_self_attention.1} parent=23 // pred_fallthru
          _
      $region24: #{causal_self_attention.1} parent=5 // pred_fallthru
        _
      %p203 = scmp.le.s32.totalorder 1, %s13
      %p204 = scmp.lt.s32.totalorder %s13, 3
      %p205 = pnand %p203, %p204
      %p206 = pneg %p205
      // Predicated region
      $region33: #{causal_self_attention.1} parent=5 // pred_check
        _
      $region34: #{causal_self_attention.1} parent=5 // pred_check_branch
        %208 = sbr.rel (%p205) target = $region36
      $region35: #{causal_self_attention.1} parent=5 // pred_region
        %s209 = ssub.s32 %s13, 1
        %p210 = pneg %p53
        %p211 = pneg %p50
        %p212 = pneg %p74
        %p213 = pneg %p71
        %p214 = scmp.lt.s32.totalorder %s23, 1
        %s215 = scalar_select %p214, %s23, 1
        %p216 = scmp.lt.s32.totalorder %s24, 0
        %s217 = scalar_select %p216, %s24, 0
        %s218 = sadd.s32 %s217, %s215
        %s219 = smul.addr %s218, 4
        %s220 = scalar_lea.vmem %s2, %s219
        %p221 = pneg %p102
        %p222 = pneg %p99
        %p223 = scmp.lt.s32.totalorder %s23, 1
        %s224 = scalar_select %p223, %s23, 1
        %p225 = scmp.lt.s32.totalorder %s25, 0
        %s226 = scalar_select %p225, %s25, 0
        %s227 = sadd.s32 %s226, %s224
        %s228 = smul.addr %s227, 4
        %s229 = scalar_lea.vmem %s3, %s228
        %p230 = pneg %p130
        %p231 = pneg %p127
        %p232 = pneg %p158
        %p233 = pneg %p155
        %s234 = sand.u32 %s145, 1
        %s235 = scalar_lea.sflag [#allocation7], %s234
        %s236 = sand.u32 %s145, 1
        %s237 = smul.addr %s236, 8
        %s238 = scalar_lea.vmem [#allocation6], %s237
        %p239 = scmp.lt.s32.totalorder %s23, 1
        %s240 = scalar_select %p239, %s23, 1
        %p241 = scmp.lt.s32.totalorder %s24, 0
        %s242 = scalar_select %p241, %s24, 0
        %s243 = sadd.s32 %s242, %s240
        %s244 = smul.addr %s243, 4
        %s245 = scalar_lea.vmem %s2, %s244
        %p246 = scmp.lt.s32.totalorder %s23, 1
        %s247 = scalar_select %p246, %s23, 1
        %p248 = scmp.lt.s32.totalorder %s25, 0
        %s249 = scalar_select %p248, %s25, 0
        %s250 = sadd.s32 %s249, %s247
        %s251 = smul.addr %s250, 4
        %s252 = scalar_lea.vmem %s3, %s251
        %p254 = scmp.eq.s32.totalorder %s25, 0
        // Predicated region
        $region37: #{causal_self_attention.1} parent=35 // pred_check
          %p255 = pneg %p254
        $region38: #{causal_self_attention.1} parent=35 // pred_check_branch
          %257 = sbr.rel (%p255) target = $region40
        $region39: #{causal_self_attention.1} parent=35 // pred_region
          %v258 = vld [vmem:[%s245] sm:$0xf]
          %v259 = vld [vmem:[%s0] sm:$0xf]
          %v260 = vld [vmem:[%s0 + $0x4] sm:$0xf]
          %v261 = vld [vmem:[%s0 + $0x8] sm:$0xf]
          %v262 = vld [vmem:[%s0 + $0xc] sm:$0xf]
          %v267 = vunpack.c.l.b16 %v259
          %v268 = vunpack.c.l.b16 %v260
          %v269 = vunpack.c.l.b16 %v261
          %v270 = vunpack.c.l.b16 %v262
          %v271 = vpack.c.b16 %v268, %v267
          %v272 = vpack.c.b16 %v270, %v269
          %vm275 = vcmask 261120
          %v277 = vsel %vm275, %v258, 0
          %279 = vmatprep.subr.bf16.mxu0 0
          %280 = vmatpush1.bf16.msra.mxu0 %v271
          %281 = vmatprep.subr.bf16.mxu0 0
          %282 = vmatpush1.bf16.msra.mxu0 %v272
          %283 = vmatprep.subr.bf16.mxu0 0
          %284 = vmatpush1.bf16.msra.mxu0 0
          %285 = vmatprep.subr.bf16.mxu0 0
          %286 = vmatpush1.bf16.msra.mxu0 0
          %287 = vmatprep.subr.bf16.mxu0 0
          %288 = vmatpush1.bf16.msra.mxu0 0
          %289 = vmatprep.subr.bf16.mxu0 0
          %290 = vmatpush1.bf16.msra.mxu0 0
          %291 = vmatprep.subr.bf16.mxu0 0
          %292 = vmatpush1.bf16.msra.mxu0 0
          %293 = vmatprep.subr.bf16.mxu0 0
          %294 = vmatpush1.bf16.msra.mxu0 0
          %295 = vmatprep.subr.bf16.mxu0 0
          %296 = vmatpush1.bf16.msra.mxu0 0
          %297 = vmatprep.subr.bf16.mxu0 0
          %298 = vmatpush1.bf16.msra.mxu0 0
          %299 = vmatprep.subr.bf16.mxu0 0
          %300 = vmatpush1.bf16.msra.mxu0 0
          %301 = vmatprep.subr.bf16.mxu0 0
          %302 = vmatpush1.bf16.msra.mxu0 0
          %303 = vmatprep.subr.bf16.mxu0 0
          %304 = vmatpush1.bf16.msra.mxu0 0
          %305 = vmatprep.subr.bf16.mxu0 0
          %306 = vmatpush1.bf16.msra.mxu0 0
          %307 = vmatprep.subr.bf16.mxu0 0
          %308 = vmatpush1.bf16.msra.mxu0 0
          %309 = vmatprep.subr.bf16.mxu0 0
          %310 = vmatpush1.bf16.msra.mxu0 0
          %311 = vmatprep.mubr.bf16.mxu0 0
          %312 = vmatmul.mubr.bf16.gmra.mrb[0].mxu0 %v277
          %v313 = vpop.f32.mrb[0].mxu0
          %v314 = vadd.f32 0.0, %v313
          %v315 = vpop.f32.mrb[0].mxu0
          %v316 = vpop.f32.mrb[0].mxu0
          %v317 = vpop.f32.mrb[0].mxu0
          %318 = vdwg.mxu0
          %v319 = vpack.c.bf16 %v314, %v314
          %vm320 = vcmask 257024
          %321 = vst.msk [vmem:[#allocation2] sm:$0xf] %vm320, %v319
          %vm322 = vcmask 7168
          %323 = vst.msk [vmem:[#allocation3] sm:$0xff] %vm322, -inf
          %324 = vst.msk [vmem:[#allocation3 + $0x8] sm:$0xff] %vm322, -inf
          %325 = vst.msk [vmem:[#allocation3 + $0x10] sm:$0xff] %vm322, -inf
          %326 = vst.msk [vmem:[#allocation3 + $0x18] sm:$0xff] %vm322, -inf
          %327 = vst.msk [vmem:[#allocation4] sm:$0xff] %vm322, 0.0
          %328 = vst.msk [vmem:[#allocation4 + $0x8] sm:$0xff] %vm322, 0.0
          %329 = vst.msk [vmem:[#allocation4 + $0x10] sm:$0xff] %vm322, 0.0
          %330 = vst.msk [vmem:[#allocation4 + $0x18] sm:$0xff] %vm322, 0.0
          %331 = vst.msk [vmem:[#allocation5] sm:$0xff] %vm275, 0.0
        $region40: #{causal_self_attention.1} parent=35 // pred_fallthru
          _
        %v332 = vld [vmem:[%s252] sm:$0xf]
        %v333 = vld [vmem:[%s1] sm:$0xf]
        %v334 = vld [vmem:[%s1 + $0x4] sm:$0xf]
        %v335 = vld [vmem:[%s1 + $0x8] sm:$0xf]
        %v336 = vld [vmem:[%s1 + $0xc] sm:$0xf]
        %v341 = vunpack.c.l.b16 %v333
        %v342 = vunpack.c.l.b16 %v334
        %v343 = vunpack.c.l.b16 %v335
        %v344 = vunpack.c.l.b16 %v336
        %v345 = vpack.c.b16 %v342, %v341
        %v346 = vpack.c.b16 %v344, %v343
        %vm349 = vcmask 261120
        %v351 = vsel %vm349, %v332, 0
        %353 = vmatprep.subr.bf16.mxu0 0
        %354 = vmatpush1.bf16.msra.mxu0 %v345
        %355 = vmatprep.subr.bf16.mxu0 0
        %356 = vmatpush1.bf16.msra.mxu0 %v346
        %357 = vmatprep.subr.bf16.mxu0 0
        %358 = vmatpush1.bf16.msra.mxu0 0
        %359 = vmatprep.subr.bf16.mxu0 0
        %360 = vmatpush1.bf16.msra.mxu0 0
        %361 = vmatprep.subr.bf16.mxu0 0
        %362 = vmatpush1.bf16.msra.mxu0 0
        %363 = vmatprep.subr.bf16.mxu0 0
        %364 = vmatpush1.bf16.msra.mxu0 0
        %365 = vmatprep.subr.bf16.mxu0 0
        %366 = vmatpush1.bf16.msra.mxu0 0
        %367 = vmatprep.subr.bf16.mxu0 0
        %368 = vmatpush1.bf16.msra.mxu0 0
        %369 = vmatprep.subr.bf16.mxu0 0
        %370 = vmatpush1.bf16.msra.mxu0 0
        %371 = vmatprep.subr.bf16.mxu0 0
        %372 = vmatpush1.bf16.msra.mxu0 0
        %373 = vmatprep.subr.bf16.mxu0 0
        %374 = vmatpush1.bf16.msra.mxu0 0
        %375 = vmatprep.subr.bf16.mxu0 0
        %376 = vmatpush1.bf16.msra.mxu0 0
        %377 = vmatprep.subr.bf16.mxu0 0
        %378 = vmatpush1.bf16.msra.mxu0 0
        %379 = vmatprep.subr.bf16.mxu0 0
        %380 = vmatpush1.bf16.msra.mxu0 0
        %381 = vmatprep.subr.bf16.mxu0 0
        %382 = vmatpush1.bf16.msra.mxu0 0
        %383 = vmatprep.subr.bf16.mxu0 0
        %384 = vmatpush1.bf16.msra.mxu0 0
        %385 = vmatprep.mubr.bf16.mxu0 0
        %386 = vmatmul.mubr.bf16.gmra.mrb[0].mxu0 %v351
        %v387 = vpop.f32.mrb[0].mxu0
        %v388 = vadd.f32 0.0, %v387
        %v389 = vpop.f32.mrb[0].mxu0
        %v390 = vpop.f32.mrb[0].mxu0
        %v391 = vpop.f32.mrb[0].mxu0
        %392 = vdwg.mxu0
        %v393 = vpack.c.bf16 %v388, %v388
        %v394 = vld [vmem:[#allocation2] sm:$0xf]
        %vm395 = vcmask 64512
        %v397 = vsel %vm395, %v394, 0
        %v400 = vsel %vm395, %v393, 0
        %402 = vmatprep.subr.bf16.mxu0 0
        %403 = vmatpush1.bf16.xpose.msra.mxu0 %v400
        %404 = vmatprep.subr.bf16.mxu0 0
        %405 = vmatpush1.bf16.xpose.msra.mxu0 0
        %406 = vmatprep.subr.bf16.mxu0 0
        %407 = vmatpush1.bf16.xpose.msra.mxu0 0
        %408 = vmatprep.subr.bf16.mxu0 0
        %409 = vmatpush1.bf16.xpose.msra.mxu0 0
        %410 = vmatprep.subr.bf16.mxu0 0
        %411 = vmatpush1.bf16.xpose.msra.mxu0 0
        %412 = vmatprep.subr.bf16.mxu0 0
        %413 = vmatpush1.bf16.xpose.msra.mxu0 0
        %414 = vmatprep.subr.bf16.mxu0 0
        %415 = vmatpush1.bf16.xpose.msra.mxu0 0
        %416 = vmatprep.subr.bf16.mxu0 0
        %417 = vmatpush1.bf16.xpose.msra.mxu0 0
        %418 = vmatprep.subr.bf16.mxu0 0
        %419 = vmatpush1.bf16.xpose.msra.mxu0 0
        %420 = vmatprep.subr.bf16.mxu0 0
        %421 = vmatpush1.bf16.xpose.msra.mxu0 0
        %422 = vmatprep.subr.bf16.mxu0 0
        %423 = vmatpush1.bf16.xpose.msra.mxu0 0
        %424 = vmatprep.subr.bf16.mxu0 0
        %425 = vmatpush1.bf16.xpose.msra.mxu0 0
        %426 = vmatprep.subr.bf16.mxu0 0
        %427 = vmatpush1.bf16.xpose.msra.mxu0 0
        %428 = vmatprep.subr.bf16.mxu0 0
        %429 = vmatpush1.bf16.xpose.msra.mxu0 0
        %430 = vmatprep.subr.bf16.mxu0 0
        %431 = vmatpush1.bf16.xpose.msra.mxu0 0
        %432 = vmatprep.subr.bf16.mxu0 0
        %433 = vmatpush1.bf16.xpose.msra.mxu0 0
        %434 = vmatprep.mubr.bf16.mxu0 0
        %435 = vmatmul.mubr.bf16.gmra.mrb[0].mxu0 %v397
        %v436 = vpop.f32.mrb[0].mxu0
        %v437 = vadd.f32 0.0, %v436
        %v438 = vpop.f32.mrb[0].mxu0
        %v439 = vpop.f32.mrb[0].mxu0
        %v440 = vpop.f32.mrb[0].mxu0
        %441 = vdwg.mxu0
        %v442 = vld [vmem:[#allocation3] sm:$0xff]
        %v443 = vsel %vm395, %v437, -inf
        %444 = vmax.xlane.f32.xlu0 %v443
        %v445 = vpop.xlane.xlu0 %444
        %v446 = vmax.f32 %v442, %v445
        %v447 = vsub.f32 %v442, %v446
        %v448 = vmul.f32 %v447, 1.442695
        %v449 = vpow.pop %v448
        %451 = vset.pattern.permute.xlu0 0
        %452 = vperm.xlu0 %451, %v446
        %v453 = vpop.permute.xlu0 %452
        %v455 = vsub.f32 %v437, %v453
        %v456 = vmul.f32 %v455, 1.442695
        %v457 = vpow.pop %v456
        %vm458 = vcmask 7168
        %459 = vst.msk [vmem:[#allocation3] sm:$0xff] %vm458, %v446
        %v460 = vld [vmem:[#allocation4] sm:$0xff]
        %v461 = vmul.f32 %v449, %v460
        %v462 = vsel %vm395, %v457, 0.0
        %463 = vadd.xlane.f32.xlu0 %v462
        %v464 = vpop.xlane.xlu0 %463
        %v465 = vadd.f32 %v461, %v464
        %466 = vst.msk [vmem:[#allocation4] sm:$0xff] %vm458, %v465
        %v467 = vpack.c.bf16 %v457, %v457
        %469 = vrot.lane.b32.xlu0 %v393, 96
        %v470 = vpop.permute.xlu0 %469
        %v472 = vsel %vm395, %v467, 0
        %vm474 = vcmask 1043456
        %v476 = vsel %vm474, %v470, 0
        %478 = vmatprep.subr.bf16.mxu0 0
        %479 = vmatpush1.bf16.msra.mxu0 %v476
        %480 = vmatprep.subr.bf16.mxu0 0
        %481 = vmatpush1.bf16.msra.mxu0 0
        %482 = vmatprep.subr.bf16.mxu0 0
        %483 = vmatpush1.bf16.msra.mxu0 0
        %484 = vmatprep.subr.bf16.mxu0 0
        %485 = vmatpush1.bf16.msra.mxu0 0
        %486 = vmatprep.subr.bf16.mxu0 0
        %487 = vmatpush1.bf16.msra.mxu0 0
        %488 = vmatprep.subr.bf16.mxu0 0
        %489 = vmatpush1.bf16.msra.mxu0 0
        %490 = vmatprep.subr.bf16.mxu0 0
        %491 = vmatpush1.bf16.msra.mxu0 0
        %492 = vmatprep.subr.bf16.mxu0 0
        %493 = vmatpush1.bf16.msra.mxu0 0
        %494 = vmatprep.subr.bf16.mxu0 0
        %495 = vmatpush1.bf16.msra.mxu0 0
        %496 = vmatprep.subr.bf16.mxu0 0
        %497 = vmatpush1.bf16.msra.mxu0 0
        %498 = vmatprep.subr.bf16.mxu0 0
        %499 = vmatpush1.bf16.msra.mxu0 0
        %500 = vmatprep.subr.bf16.mxu0 0
        %501 = vmatpush1.bf16.msra.mxu0 0
        %502 = vmatprep.subr.bf16.mxu0 0
        %503 = vmatpush1.bf16.msra.mxu0 0
        %504 = vmatprep.subr.bf16.mxu0 0
        %505 = vmatpush1.bf16.msra.mxu0 0
        %506 = vmatprep.subr.bf16.mxu0 0
        %507 = vmatpush1.bf16.msra.mxu0 0
        %508 = vmatprep.subr.bf16.mxu0 0
        %509 = vmatpush1.bf16.msra.mxu0 0
        %510 = vmatprep.mubr.bf16.mxu0 0
        %511 = vmatmul.mubr.bf16.gmra.mrb[0].mxu0 %v472
        %v512 = vpop.f32.mrb[0].mxu0
        %v513 = vadd.f32 0.0, %v512
        %v514 = vpop.f32.mrb[0].mxu0
        %v515 = vpop.f32.mrb[0].mxu0
        %v516 = vpop.f32.mrb[0].mxu0
        %517 = vdwg.mxu0
        %v518 = vld [vmem:[#allocation5] sm:$0xff]
        %520 = vset.pattern.permute.xlu0 0
        %521 = vperm.xlu0 %520, %v449
        %v522 = vpop.permute.xlu0 %521
        %v524 = vmul.f32 %v522, %v518
        %v525 = vadd.f32 %v524, %v513
        %526 = vst.msk [vmem:[#allocation5] sm:$0xff] %vm395, %v525
        %v527 = vld [vmem:[#allocation2] sm:$0xf]
        %v529 = vunpack.c.l.b16 %v527
        %v530 = vpack.c.b16 %v529, %v529
        %531 = vrot.lane.b32.xlu0 %v530, 120
        %v532 = vpop.permute.xlu0 %531
        %533 = vrot.lane.b32.xlu0 %v393, 120
        %v534 = vpop.permute.xlu0 %533
        %v536 = vsel %vm395, %v532, 0
        %v539 = vsel %vm395, %v534, 0
        %541 = vmatprep.subr.bf16.mxu0 0
        %542 = vmatpush1.bf16.xpose.msra.mxu0 %v539
        %543 = vmatprep.subr.bf16.mxu0 0
        %544 = vmatpush1.bf16.xpose.msra.mxu0 0
        %545 = vmatprep.subr.bf16.mxu0 0
        %546 = vmatpush1.bf16.xpose.msra.mxu0 0
        %547 = vmatprep.subr.bf16.mxu0 0
        %548 = vmatpush1.bf16.xpose.msra.mxu0 0
        %549 = vmatprep.subr.bf16.mxu0 0
        %550 = vmatpush1.bf16.xpose.msra.mxu0 0
        %551 = vmatprep.subr.bf16.mxu0 0
        %552 = vmatpush1.bf16.xpose.msra.mxu0 0
        %553 = vmatprep.subr.bf16.mxu0 0
        %554 = vmatpush1.bf16.xpose.msra.mxu0 0
        %555 = vmatprep.subr.bf16.mxu0 0
        %556 = vmatpush1.bf16.xpose.msra.mxu0 0
        %557 = vmatprep.subr.bf16.mxu0 0
        %558 = vmatpush1.bf16.xpose.msra.mxu0 0
        %559 = vmatprep.subr.bf16.mxu0 0
        %560 = vmatpush1.bf16.xpose.msra.mxu0 0
        %561 = vmatprep.subr.bf16.mxu0 0
        %562 = vmatpush1.bf16.xpose.msra.mxu0 0
        %563 = vmatprep.subr.bf16.mxu0 0
        %564 = vmatpush1.bf16.xpose.msra.mxu0 0
        %565 = vmatprep.subr.bf16.mxu0 0
        %566 = vmatpush1.bf16.xpose.msra.mxu0 0
        %567 = vmatprep.subr.bf16.mxu0 0
        %568 = vmatpush1.bf16.xpose.msra.mxu0 0
        %569 = vmatprep.subr.bf16.mxu0 0
        %570 = vmatpush1.bf16.xpose.msra.mxu0 0
        %571 = vmatprep.subr.bf16.mxu0 0
        %572 = vmatpush1.bf16.xpose.msra.mxu0 0
        %573 = vmatprep.mubr.bf16.mxu0 0
        %574 = vmatmul.mubr.bf16.gmra.mrb[0].mxu0 %v536
        %v575 = vpop.f32.mrb[0].mxu0
        %v576 = vadd.f32 0.0, %v575
        %v577 = vpop.f32.mrb[0].mxu0
        %v578 = vpop.f32.mrb[0].mxu0
        %v579 = vpop.f32.mrb[0].mxu0
        %580 = vdwg.mxu0
        %s581 = scalar_lea.vmem [#allocation3], 8
        %v582 = vld [vmem:[%s581] sm:$0xff]
        %v583 = vsel %vm395, %v576, -inf
        %584 = vmax.xlane.f32.xlu0 %v583
        %v585 = vpop.xlane.xlu0 %584
        %v586 = vmax.f32 %v582, %v585
        %v587 = vsub.f32 %v582, %v586
        %v588 = vmul.f32 %v587, 1.442695
        %v589 = vpow.pop %v588
        %591 = vset.pattern.permute.xlu0 0
        %592 = vperm.xlu0 %591, %v586
        %v593 = vpop.permute.xlu0 %592
        %v595 = vsub.f32 %v576, %v593
        %v596 = vmul.f32 %v595, 1.442695
        %v597 = vpow.pop %v596
        %598 = vst.msk [vmem:[%s581] sm:$0xff] %vm458, %v586
        %s599 = scalar_lea.vmem [#allocation4], 8
        %v600 = vld [vmem:[%s599] sm:$0xff]
        %v601 = vmul.f32 %v589, %v600
        %v602 = vsel %vm395, %v597, 0.0
        %603 = vadd.xlane.f32.xlu0 %v602
        %v604 = vpop.xlane.xlu0 %603
        %v605 = vadd.f32 %v601, %v604
        %606 = vst.msk [vmem:[%s599] sm:$0xff] %vm458, %v605
        %v607 = vpack.c.bf16 %v597, %v597
        %608 = vrot.lane.b32.xlu0 %v393, 88
        %v609 = vpop.permute.xlu0 %608
        %v611 = vsel %vm395, %v607, 0
        %v614 = vsel %vm474, %v609, 0
        %616 = vmatprep.subr.bf16.mxu0 0
        %617 = vmatpush1.bf16.msra.mxu0 %v614
        %618 = vmatprep.subr.bf16.mxu0 0
        %619 = vmatpush1.bf16.msra.mxu0 0
        %620 = vmatprep.subr.bf16.mxu0 0
        %621 = vmatpush1.bf16.msra.mxu0 0
        %622 = vmatprep.subr.bf16.mxu0 0
        %623 = vmatpush1.bf16.msra.mxu0 0
        %624 = vmatprep.subr.bf16.mxu0 0
        %625 = vmatpush1.bf16.msra.mxu0 0
        %626 = vmatprep.subr.bf16.mxu0 0
        %627 = vmatpush1.bf16.msra.mxu0 0
        %628 = vmatprep.subr.bf16.mxu0 0
        %629 = vmatpush1.bf16.msra.mxu0 0
        %630 = vmatprep.subr.bf16.mxu0 0
        %631 = vmatpush1.bf16.msra.mxu0 0
        %632 = vmatprep.subr.bf16.mxu0 0
        %633 = vmatpush1.bf16.msra.mxu0 0
        %634 = vmatprep.subr.bf16.mxu0 0
        %635 = vmatpush1.bf16.msra.mxu0 0
        %636 = vmatprep.subr.bf16.mxu0 0
        %637 = vmatpush1.bf16.msra.mxu0 0
        %638 = vmatprep.subr.bf16.mxu0 0
        %639 = vmatpush1.bf16.msra.mxu0 0
        %640 = vmatprep.subr.bf16.mxu0 0
        %641 = vmatpush1.bf16.msra.mxu0 0
        %642 = vmatprep.subr.bf16.mxu0 0
        %643 = vmatpush1.bf16.msra.mxu0 0
        %644 = vmatprep.subr.bf16.mxu0 0
        %645 = vmatpush1.bf16.msra.mxu0 0
        %646 = vmatprep.subr.bf16.mxu0 0
        %647 = vmatpush1.bf16.msra.mxu0 0
        %648 = vmatprep.mubr.bf16.mxu0 0
        %649 = vmatmul.mubr.bf16.gmra.mrb[0].mxu0 %v611
        %v650 = vpop.f32.mrb[0].mxu0
        %v651 = vadd.f32 0.0, %v650
        %v652 = vpop.f32.mrb[0].mxu0
        %v653 = vpop.f32.mrb[0].mxu0
        %v654 = vpop.f32.mrb[0].mxu0
        %655 = vdwg.mxu0
        %v656 = vld [vmem:[#allocation5] sm:$0xff]
        %658 = vset.pattern.permute.xlu0 0
        %659 = vperm.xlu0 %658, %v589
        %v660 = vpop.permute.xlu0 %659
        %v662 = vmul.f32 %v660, %v656
        %664 = vrot.lane.b32.xlu0 %v651, 8
        %v665 = vpop.permute.xlu0 %664
        %v667 = vadd.f32 %v662, %v665
        %vm668 = vcmask 130112
        %669 = vst.msk [vmem:[#allocation5] sm:$0xff] %vm668, %v667
        %v670 = vld [vmem:[#allocation2] sm:$0xf]
        %v672 = vunpack.c.l.b16 %v670
        %v673 = vpack.c.b16 %v672, %v672
        %674 = vrot.lane.b32.xlu0 %v673, 112
        %v675 = vpop.permute.xlu0 %674
        %676 = vrot.lane.b32.xlu0 %v393, 112
        %v677 = vpop.permute.xlu0 %676
        %v679 = vsel %vm395, %v675, 0
        %v682 = vsel %vm395, %v677, 0
        %684 = vmatprep.subr.bf16.mxu0 0
        %685 = vmatpush1.bf16.xpose.msra.mxu0 %v682
        %686 = vmatprep.subr.bf16.mxu0 0
        %687 = vmatpush1.bf16.xpose.msra.mxu0 0
        %688 = vmatprep.subr.bf16.mxu0 0
        %689 = vmatpush1.bf16.xpose.msra.mxu0 0
        %690 = vmatprep.subr.bf16.mxu0 0
        %691 = vmatpush1.bf16.xpose.msra.mxu0 0
        %692 = vmatprep.subr.bf16.mxu0 0
        %693 = vmatpush1.bf16.xpose.msra.mxu0 0
        %694 = vmatprep.subr.bf16.mxu0 0
        %695 = vmatpush1.bf16.xpose.msra.mxu0 0
        %696 = vmatprep.subr.bf16.mxu0 0
        %697 = vmatpush1.bf16.xpose.msra.mxu0 0
        %698 = vmatprep.subr.bf16.mxu0 0
        %699 = vmatpush1.bf16.xpose.msra.mxu0 0
        %700 = vmatprep.subr.bf16.mxu0 0
        %701 = vmatpush1.bf16.xpose.msra.mxu0 0
        %702 = vmatprep.subr.bf16.mxu0 0
        %703 = vmatpush1.bf16.xpose.msra.mxu0 0
        %704 = vmatprep.subr.bf16.mxu0 0
        %705 = vmatpush1.bf16.xpose.msra.mxu0 0
        %706 = vmatprep.subr.bf16.mxu0 0
        %707 = vmatpush1.bf16.xpose.msra.mxu0 0
        %708 = vmatprep.subr.bf16.mxu0 0
        %709 = vmatpush1.bf16.xpose.msra.mxu0 0
        %710 = vmatprep.subr.bf16.mxu0 0
        %711 = vmatpush1.bf16.xpose.msra.mxu0 0
        %712 = vmatprep.subr.bf16.mxu0 0
        %713 = vmatpush1.bf16.xpose.msra.mxu0 0
        %714 = vmatprep.subr.bf16.mxu0 0
        %715 = vmatpush1.bf16.xpose.msra.mxu0 0
        %716 = vmatprep.mubr.bf16.mxu0 0
        %717 = vmatmul.mubr.bf16.gmra.mrb[0].mxu0 %v679
        %v718 = vpop.f32.mrb[0].mxu0
        %v719 = vadd.f32 0.0, %v718
        %v720 = vpop.f32.mrb[0].mxu0
        %v721 = vpop.f32.mrb[0].mxu0
        %v722 = vpop.f32.mrb[0].mxu0
        %723 = vdwg.mxu0
        %s724 = scalar_lea.vmem [#allocation3], 16
        %v725 = vld [vmem:[%s724] sm:$0xff]
        %v726 = vsel %vm395, %v719, -inf
        %727 = vmax.xlane.f32.xlu0 %v726
        %v728 = vpop.xlane.xlu0 %727
        %v729 = vmax.f32 %v725, %v728
        %v730 = vsub.f32 %v725, %v729
        %v731 = vmul.f32 %v730, 1.442695
        %v732 = vpow.pop %v731
        %734 = vset.pattern.permute.xlu0 0
        %735 = vperm.xlu0 %734, %v729
        %v736 = vpop.permute.xlu0 %735
        %v738 = vsub.f32 %v719, %v736
        %v739 = vmul.f32 %v738, 1.442695
        %v740 = vpow.pop %v739
        %741 = vst.msk [vmem:[%s724] sm:$0xff] %vm458, %v729
        %s742 = scalar_lea.vmem [#allocation4], 16
        %v743 = vld [vmem:[%s742] sm:$0xff]
        %v744 = vmul.f32 %v732, %v743
        %v745 = vsel %vm395, %v740, 0.0
        %746 = vadd.xlane.f32.xlu0 %v745
        %v747 = vpop.xlane.xlu0 %746
        %v748 = vadd.f32 %v744, %v747
        %749 = vst.msk [vmem:[%s742] sm:$0xff] %vm458, %v748
        %v750 = vpack.c.bf16 %v740, %v740
        %751 = vrot.lane.b32.xlu0 %v393, 80
        %v752 = vpop.permute.xlu0 %751
        %v754 = vsel %vm395, %v750, 0
        %v757 = vsel %vm474, %v752, 0
        %759 = vmatprep.subr.bf16.mxu0 0
        %760 = vmatpush1.bf16.msra.mxu0 %v757
        %761 = vmatprep.subr.bf16.mxu0 0
        %762 = vmatpush1.bf16.msra.mxu0 0
        %763 = vmatprep.subr.bf16.mxu0 0
        %764 = vmatpush1.bf16.msra.mxu0 0
        %765 = vmatprep.subr.bf16.mxu0 0
        %766 = vmatpush1.bf16.msra.mxu0 0
        %767 = vmatprep.subr.bf16.mxu0 0
        %768 = vmatpush1.bf16.msra.mxu0 0
        %769 = vmatprep.subr.bf16.mxu0 0
        %770 = vmatpush1.bf16.msra.mxu0 0
        %771 = vmatprep.subr.bf16.mxu0 0
        %772 = vmatpush1.bf16.msra.mxu0 0
        %773 = vmatprep.subr.bf16.mxu0 0
        %774 = vmatpush1.bf16.msra.mxu0 0
        %775 = vmatprep.subr.bf16.mxu0 0
        %776 = vmatpush1.bf16.msra.mxu0 0
        %777 = vmatprep.subr.bf16.mxu0 0
        %778 = vmatpush1.bf16.msra.mxu0 0
        %779 = vmatprep.subr.bf16.mxu0 0
        %780 = vmatpush1.bf16.msra.mxu0 0
        %781 = vmatprep.subr.bf16.mxu0 0
        %782 = vmatpush1.bf16.msra.mxu0 0
        %783 = vmatprep.subr.bf16.mxu0 0
        %784 = vmatpush1.bf16.msra.mxu0 0
        %785 = vmatprep.subr.bf16.mxu0 0
        %786 = vmatpush1.bf16.msra.mxu0 0
        %787 = vmatprep.subr.bf16.mxu0 0
        %788 = vmatpush1.bf16.msra.mxu0 0
        %789 = vmatprep.subr.bf16.mxu0 0
        %790 = vmatpush1.bf16.msra.mxu0 0
        %791 = vmatprep.mubr.bf16.mxu0 0
        %792 = vmatmul.mubr.bf16.gmra.mrb[0].mxu0 %v754
        %v793 = vpop.f32.mrb[0].mxu0
        %v794 = vadd.f32 0.0, %v793
        %v795 = vpop.f32.mrb[0].mxu0
        %v796 = vpop.f32.mrb[0].mxu0
        %v797 = vpop.f32.mrb[0].mxu0
        %798 = vdwg.mxu0
        %v799 = vld [vmem:[#allocation5] sm:$0xff]
        %801 = vset.pattern.permute.xlu0 0
        %802 = vperm.xlu0 %801, %v732
        %v803 = vpop.permute.xlu0 %802
        %v805 = vmul.f32 %v803, %v799
        %807 = vrot.lane.b32.xlu0 %v794, 16
        %v808 = vpop.permute.xlu0 %807
        %v810 = vadd.f32 %v805, %v808
        %vm811 = vcmask 195712
        %812 = vst.msk [vmem:[#allocation5] sm:$0xff] %vm811, %v810
        %v813 = vld [vmem:[#allocation2] sm:$0xf]
        %v815 = vunpack.c.l.b16 %v813
        %v816 = vpack.c.b16 %v815, %v815
        %817 = vrot.lane.b32.xlu0 %v816, 104
        %v818 = vpop.permute.xlu0 %817
        %819 = vrot.lane.b32.xlu0 %v393, 104
        %v820 = vpop.permute.xlu0 %819
        %v822 = vsel %vm395, %v818, 0
        %v825 = vsel %vm395, %v820, 0
        %827 = vmatprep.subr.bf16.mxu0 0
        %828 = vmatpush1.bf16.xpose.msra.mxu0 %v825
        %829 = vmatprep.subr.bf16.mxu0 0
        %830 = vmatpush1.bf16.xpose.msra.mxu0 0
        %831 = vmatprep.subr.bf16.mxu0 0
        %832 = vmatpush1.bf16.xpose.msra.mxu0 0
        %833 = vmatprep.subr.bf16.mxu0 0
        %834 = vmatpush1.bf16.xpose.msra.mxu0 0
        %835 = vmatprep.subr.bf16.mxu0 0
        %836 = vmatpush1.bf16.xpose.msra.mxu0 0
        %837 = vmatprep.subr.bf16.mxu0 0
        %838 = vmatpush1.bf16.xpose.msra.mxu0 0
        %839 = vmatprep.subr.bf16.mxu0 0
        %840 = vmatpush1.bf16.xpose.msra.mxu0 0
        %841 = vmatprep.subr.bf16.mxu0 0
        %842 = vmatpush1.bf16.xpose.msra.mxu0 0
        %843 = vmatprep.subr.bf16.mxu0 0
        %844 = vmatpush1.bf16.xpose.msra.mxu0 0
        %845 = vmatprep.subr.bf16.mxu0 0
        %846 = vmatpush1.bf16.xpose.msra.mxu0 0
        %847 = vmatprep.subr.bf16.mxu0 0
        %848 = vmatpush1.bf16.xpose.msra.mxu0 0
        %849 = vmatprep.subr.bf16.mxu0 0
        %850 = vmatpush1.bf16.xpose.msra.mxu0 0
        %851 = vmatprep.subr.bf16.mxu0 0
        %852 = vmatpush1.bf16.xpose.msra.mxu0 0
        %853 = vmatprep.subr.bf16.mxu0 0
        %854 = vmatpush1.bf16.xpose.msra.mxu0 0
        %855 = vmatprep.subr.bf16.mxu0 0
        %856 = vmatpush1.bf16.xpose.msra.mxu0 0
        %857 = vmatprep.subr.bf16.mxu0 0
        %858 = vmatpush1.bf16.xpose.msra.mxu0 0
        %859 = vmatprep.mubr.bf16.mxu0 0
        %860 = vmatmul.mubr.bf16.gmra.mrb[0].mxu0 %v822
        %v861 = vpop.f32.mrb[0].mxu0
        %v862 = vadd.f32 0.0, %v861
        %v863 = vpop.f32.mrb[0].mxu0
        %v864 = vpop.f32.mrb[0].mxu0
        %v865 = vpop.f32.mrb[0].mxu0
        %866 = vdwg.mxu0
        %s867 = scalar_lea.vmem [#allocation3], 24
        %v868 = vld [vmem:[%s867] sm:$0xff]
        %v869 = vsel %vm395, %v862, -inf
        %870 = vmax.xlane.f32.xlu0 %v869
        %v871 = vpop.xlane.xlu0 %870
        %v872 = vmax.f32 %v868, %v871
        %v873 = vsub.f32 %v868, %v872
        %v874 = vmul.f32 %v873, 1.442695
        %v875 = vpow.pop %v874
        %877 = vset.pattern.permute.xlu0 0
        %878 = vperm.xlu0 %877, %v872
        %v879 = vpop.permute.xlu0 %878
        %v881 = vsub.f32 %v862, %v879
        %v882 = vmul.f32 %v881, 1.442695
        %v883 = vpow.pop %v882
        %884 = vst.msk [vmem:[%s867] sm:$0xff] %vm458, %v872
        %s885 = scalar_lea.vmem [#allocation4], 24
        %v886 = vld [vmem:[%s885] sm:$0xff]
        %v887 = vmul.f32 %v875, %v886
        %v888 = vsel %vm395, %v883, 0.0
        %889 = vadd.xlane.f32.xlu0 %v888
        %v890 = vpop.xlane.xlu0 %889
        %v891 = vadd.f32 %v887, %v890
        %892 = vst.msk [vmem:[%s885] sm:$0xff] %vm458, %v891
        %v893 = vpack.c.bf16 %v883, %v883
        %894 = vrot.lane.b32.xlu0 %v393, 72
        %v895 = vpop.permute.xlu0 %894
        %v897 = vsel %vm395, %v893, 0
        %v900 = vsel %vm474, %v895, 0
        %902 = vmatprep.subr.bf16.mxu0 0
        %903 = vmatpush1.bf16.msra.mxu0 %v900
        %904 = vmatprep.subr.bf16.mxu0 0
        %905 = vmatpush1.bf16.msra.mxu0 0
        %906 = vmatprep.subr.bf16.mxu0 0
        %907 = vmatpush1.bf16.msra.mxu0 0
        %908 = vmatprep.subr.bf16.mxu0 0
        %909 = vmatpush1.bf16.msra.mxu0 0
        %910 = vmatprep.subr.bf16.mxu0 0
        %911 = vmatpush1.bf16.msra.mxu0 0
        %912 = vmatprep.subr.bf16.mxu0 0
        %913 = vmatpush1.bf16.msra.mxu0 0
        %914 = vmatprep.subr.bf16.mxu0 0
        %915 = vmatpush1.bf16.msra.mxu0 0
        %916 = vmatprep.subr.bf16.mxu0 0
        %917 = vmatpush1.bf16.msra.mxu0 0
        %918 = vmatprep.subr.bf16.mxu0 0
        %919 = vmatpush1.bf16.msra.mxu0 0
        %920 = vmatprep.subr.bf16.mxu0 0
        %921 = vmatpush1.bf16.msra.mxu0 0
        %922 = vmatprep.subr.bf16.mxu0 0
        %923 = vmatpush1.bf16.msra.mxu0 0
        %924 = vmatprep.subr.bf16.mxu0 0
        %925 = vmatpush1.bf16.msra.mxu0 0
        %926 = vmatprep.subr.bf16.mxu0 0
        %927 = vmatpush1.bf16.msra.mxu0 0
        %928 = vmatprep.subr.bf16.mxu0 0
        %929 = vmatpush1.bf16.msra.mxu0 0
        %930 = vmatprep.subr.bf16.mxu0 0
        %931 = vmatpush1.bf16.msra.mxu0 0
        %932 = vmatprep.subr.bf16.mxu0 0
        %933 = vmatpush1.bf16.msra.mxu0 0
        %934 = vmatprep.mubr.bf16.mxu0 0
        %935 = vmatmul.mubr.bf16.gmra.mrb[0].mxu0 %v897
        %v936 = vpop.f32.mrb[0].mxu0
        %v937 = vadd.f32 0.0, %v936
        %v938 = vpop.f32.mrb[0].mxu0
        %v939 = vpop.f32.mrb[0].mxu0
        %v940 = vpop.f32.mrb[0].mxu0
        %941 = vdwg.mxu0
        %v942 = vld [vmem:[#allocation5] sm:$0xff]
        %944 = vset.pattern.permute.xlu0 0
        %945 = vperm.xlu0 %944, %v875
        %v946 = vpop.permute.xlu0 %945
        %v948 = vmul.f32 %v946, %v942
        %950 = vrot.lane.b32.xlu0 %v937, 24
        %v951 = vpop.permute.xlu0 %950
        %v953 = vadd.f32 %v948, %v951
        %vm954 = vcmask 261312
        %955 = vst.msk [vmem:[#allocation5] sm:$0xff] %vm954, %v953
        // Predicated region
        $region41: #{causal_self_attention.1} parent=35 // pred_check
          %p956 = pneg %p254
        $region42: #{causal_self_attention.1} parent=35 // pred_check_branch
          %958 = sbr.rel (%p956) target = $region44
        $region43: #{causal_self_attention.1} parent=35 // pred_region
          %v959 = vld [vmem:[#allocation4] sm:$0xff]
          %v960 = vrcp.pop %v959
          %v961 = vld [vmem:[#allocation5] sm:$0xff]
          %963 = vset.pattern.permute.xlu0 0
          %964 = vperm.xlu0 %963, %v960
          %v965 = vpop.permute.xlu0 %964
          %v967 = vmul.f32 %v961, %v965
          %968 = vst.msk [vmem:[%s238] sm:$0xff] %vm395, %v967
          %v969 = vld [vmem:[%s599] sm:$0xff]
          %v970 = vrcp.pop %v969
          %v971 = vld [vmem:[#allocation5] sm:$0xff]
          %973 = vset.pattern.permute.xlu0 0
          %974 = vperm.xlu0 %973, %v970
          %v975 = vpop.permute.xlu0 %974
          %v977 = vmul.f32 %v971, %v975
          %978 = vst.msk [vmem:[%s238] sm:$0xff] %vm668, %v977
          %v979 = vld [vmem:[%s742] sm:$0xff]
          %v980 = vrcp.pop %v979
          %v981 = vld [vmem:[#allocation5] sm:$0xff]
          %983 = vset.pattern.permute.xlu0 0
          %984 = vperm.xlu0 %983, %v980
          %v985 = vpop.permute.xlu0 %984
          %v987 = vmul.f32 %v981, %v985
          %988 = vst.msk [vmem:[%s238] sm:$0xff] %vm811, %v987
          %v989 = vld [vmem:[%s885] sm:$0xff]
          %v990 = vrcp.pop %v989
          %v991 = vld [vmem:[#allocation5] sm:$0xff]
          %993 = vset.pattern.permute.xlu0 0
          %994 = vperm.xlu0 %993, %v990
          %v995 = vpop.permute.xlu0 %994
          %v997 = vmul.f32 %v991, %v995
          %998 = vst.msk [vmem:[%s238] sm:$0xff] %vm954, %v997
        $region44: #{causal_self_attention.1} parent=35 // pred_fallthru
          _
        %s999 = sand.u32 %s145, 1
        %s1000 = scalar_lea.sflag [#allocation7], %s999
        %s1001 = sand.u32 %s145, 1
        %s1002 = smul.addr %s1001, 8
        %s1003 = scalar_lea.vmem [#allocation6], %s1002
        // Predicated region
        $region45: #{causal_self_attention.1} parent=35 // pred_check
          %p1004 = pneg %p155
        $region46: #{causal_self_attention.1} parent=35 // pred_check_branch
          %1006 = sbr.rel (%p1004) target = $region48
        $region47: #{causal_self_attention.1} parent=35 // pred_region
          %s1008 = ssub.s32 128, 128
          %1009 = vsyncadd %s1000, %s1008
          %s1010 = sadd.s32 %s24, %s23
          %s1011 = smul.addr %s1010, 128
          %s1012 = scalar_lea.hbm %s4, %s1011
          %s1014 = sshll.u32 %s1003, 4
          %s1015 = int_to_ptr.vmem [resolvable:$true] %s1014
          %1017 = dma.vmem_to_hbm [thread:$0]  %s1015, 128, %s1012, %s1000
        $region48: #{causal_self_attention.1} parent=35 // pred_fallthru
          _
      $region36: #{causal_self_attention.1} parent=5 // pred_fallthru
        _
      %p1018 = scmp.le.s32.totalorder 2, %s13
      // Predicated region
      $region49: #{causal_self_attention.1} parent=5 // pred_check
        %p1019 = pneg %p1018
      $region50: #{causal_self_attention.1} parent=5 // pred_check_branch
        %1021 = sbr.rel (%p1019) target = $region52
      $region51: #{causal_self_attention.1} parent=5 // pred_region
        %s1022 = ssub.s32 %s13, 2
        // Predicated region
        $region53: #{causal_self_attention.1} parent=51 // pred_check
          %p1023 = pneg %p161
        $region54: #{causal_self_attention.1} parent=51 // pred_check_branch
          %1025 = sbr.rel (%p1023) target = $region56
        $region55: #{causal_self_attention.1} parent=51 // pred_region
          %s1026 = sand.u32 %s146, 1
          %s1027 = scalar_lea.sflag [#allocation7], %s1026
          %s1028 = sand.u32 %s146, 1
          %s1029 = smul.addr %s1028, 8
          %s1030 = scalar_lea.vmem [#allocation6], %s1029
          %1031 = dma.done %s1027, 128
        $region56: #{causal_self_attention.1} parent=51 // pred_fallthru
          _
      $region52: #{causal_self_attention.1} parent=5 // pred_fallthru
        _
    $region6: #{causal_self_attention.1} parent=1 // loop_footer
      %s17 = sadd.s32 1, %s13
    $region7: #{causal_self_attention.1} parent=1 // loop_footer_branch
      %12 = sbr.rel target = $region3
    $region8: #{causal_self_attention.1} parent=1 // loop_exit
      _
    %1032 = vsyncpa [#allocation7], 1
    %s1033 = scalar_lea.sflag [#allocation7], 1
    %1034 = vsyncpa %s1033, 1

</llo_original>
